<compile_context>
chip_gen: v7x
topology: tpu7x:2x2x1
jax: 0.10.0
libtpu: 0.0.40
codegen_flags: <defaults>
</compile_context>

<pallas_src>
import functools

import jax
import jax.numpy as jnp
import numpy as np
from jax.experimental import pallas as pl
from jax.experimental.pallas import tpu as pltpu


def _round_up(x, m):
    return ((x + m - 1) // m) * m


def _pad_axis(x, axis, target):
    pad = target - x.shape[axis]
    if pad == 0:
        return x
    widths = [(0, 0)] * x.ndim
    widths[axis] = (0, pad)
    return jnp.pad(x, widths)


def _bilinear_attention_kernel(q_ref, k_ref, val_ref, wq_ref, bq_ref, wk_ref, v_ref,
                               h_ref, attn_ref, norm_ref, *, lk_valid, h_chunk):
    Bt, Lq, Dq = q_ref.shape
    _, Lk, Dk = k_ref.shape
    H = wq_ref.shape[1]

    # ---- projections: fold the batch tile into the MXU M dimension -------------------
    q2 = q_ref[...].reshape(Bt * Lq, Dq)
    k2 = k_ref[...].reshape(Bt * Lk, Dk)
    wq = jnp.dot(q2, wq_ref[...], preferred_element_type=jnp.float32) + bq_ref[...]   # (Bt*Lq, H)
    uh = jnp.dot(k2, wk_ref[...], preferred_element_type=jnp.float32)                 # (Bt*Lk, H)

    v_col = v_ref[...]          # (H, 1): hidden on sublanes (pre-arranged by the wrapper)

    # additive mask for zero-padded key positions (hoisted out of all loops)
    if lk_valid < Lk:
        key_ids = jax.lax.broadcasted_iota(jnp.int32, (Lq, Lk), dimension=1)
        pad_bias = jnp.where(key_ids < lk_valid, 0.0, -1e30).astype(jnp.float32)
    else:
        pad_bias = None

    n_chunks = H // h_chunk
    for b in range(Bt):
        # hidden on sublanes, sequence lane-dense
        wq_bT = wq[b * Lq:(b + 1) * Lq, :].T        # (H, Lq)
        uh_bT = uh[b * Lk:(b + 1) * Lk, :].T        # (H, Lk)

        # attn[q,k] = sum_h v[h] * tanh(wq[q,h] + uh[k,h]); chunked over H so the live
        # intermediate is only (h_chunk, Lq, Lk) and the reduce is a VALU accumulate
        # over the leading axis (no (Lq,Lk,H) blow-up, no cross-lane XLU reduce).
        acc = jnp.zeros((Lq, Lk), jnp.float32)
        for c in range(n_chunks):
            sl = slice(c * h_chunk, (c + 1) * h_chunk)
            t = jnp.tanh(wq_bT[sl, :][:, :, None] + uh_bT[sl, :][:, None, :])   # (hc, Lq, Lk)
            acc = acc + jnp.sum(t * v_col[sl, :][:, :, None], axis=0)           # (Lq, Lk)

        # softmax over keys (padded keys masked out); accumulator / denom kept in f32
        masked = acc if pad_bias is None else acc + pad_bias
        m = jnp.max(masked, axis=-1, keepdims=True)
        e = jnp.exp(masked - m)
        denom = jnp.sum(e, axis=-1, keepdims=True)
        norm = e * pl.reciprocal(denom, approx=False)

        h = jnp.dot(norm, val_ref[b], preferred_element_type=jnp.float32)       # (Lq, Dv)

        h_ref[b] = h.astype(h_ref.dtype)
        attn_ref[b] = acc.astype(attn_ref.dtype)
        norm_ref[b] = norm.astype(norm_ref.dtype)


def bilinear_attention(query, key, value, wq_t, bq, wk_t, v_row, *,
                       h_chunk=8, interpret=False):
    """query [B,Lq,Dq], key [B,Lk,Dk], value [B,Lk,Dv],
       wq_t [Dq,H] (= linear_query.weight.T), bq [H],
       wk_t [Dk,H] (= linear_key.weight.T),  v_row [1,H] (= v.weight)."""
    B, Lq, Dq = query.shape
    _, Lk, Dk = key.shape
    Dv = value.shape[-1]
    H = wq_t.shape[-1]

    # ---- pad to TPU-friendly shapes (lane dims -> 128, sublane dims -> 8) -------------
    lq_tile = 128 if Lq > 128 else _round_up(Lq, 8)
    Lq_p = _round_up(Lq, lq_tile)
    Lk_p = _round_up(Lk, 128)          # lane dim of attn/norm outputs -> lane-dense stores
    Dq_p = _round_up(Dq, 128)
    Dk_p = _round_up(Dk, 128)
    Dv_p = _round_up(Dv, 128)
    H_p = _round_up(H, h_chunk)        # chunk-align only: tanh work scales with Lq*Lk*H_p

    q_p = _pad_axis(_pad_axis(query, 1, Lq_p), 2, Dq_p)
    k_p = _pad_axis(_pad_axis(key, 1, Lk_p), 2, Dk_p)
    val_p = _pad_axis(_pad_axis(value, 1, Lk_p), 2, Dv_p)
    wq_p = _pad_axis(_pad_axis(wq_t, 0, Dq_p), 1, H_p)
    wk_p = _pad_axis(_pad_axis(wk_t, 0, Dk_p), 1, H_p)
    bq_p = _pad_axis(bq.reshape(1, H), 1, H_p)                      # (1, H_p)
    v_p = _pad_axis(v_row.reshape(1, H), 1, H_p).reshape(H_p, 1)    # (H_p, 1)

    # ---- batch tiling: fill the MXU M dim but keep >= 2 parallel grid steps -----------
    max_bt = max(1, 256 // lq_tile)
    cands = [d for d in range(1, B + 1) if B % d == 0 and d <= max_bt]
    bt = max(cands)
    if B // bt < 2:
        two_step = [d for d in cands if B // d >= 2]
        if two_step:
            bt = max(two_step)

    grid = (B // bt, Lq_p // lq_tile)

    kernel = functools.partial(_bilinear_attention_kernel, lk_valid=Lk, h_chunk=h_chunk)

    out_shapes = (
        jax.ShapeDtypeStruct((B, Lq_p, Dv_p), jnp.float32),   # h
        jax.ShapeDtypeStruct((B, Lq_p, Lk_p), jnp.float32),   # attn (pre-softmax)
        jax.ShapeDtypeStruct((B, Lq_p, Lk_p), jnp.float32),   # norm_attn
    )

    grid_spec = pltpu.PrefetchScalarGridSpec(
        num_scalar_prefetch=0,
        grid=grid,
        in_specs=[
            pl.BlockSpec((bt, lq_tile, Dq_p), lambda i, j: (i, j, 0)),   # query tile
            pl.BlockSpec((bt, Lk_p, Dk_p), lambda i, j: (i, 0, 0)),      # key (whole Lk)
            pl.BlockSpec((bt, Lk_p, Dv_p), lambda i, j: (i, 0, 0)),      # value (whole Lk)
            pl.BlockSpec((Dq_p, H_p), lambda i, j: (0, 0)),              # Wq^T  (VMEM-resident)
            pl.BlockSpec((1, H_p), lambda i, j: (0, 0)),                 # bq    (resident)
            pl.BlockSpec((Dk_p, H_p), lambda i, j: (0, 0)),              # Wk^T  (resident)
            pl.BlockSpec((H_p, 1), lambda i, j: (0, 0)),                 # v col (resident)
        ],
        out_specs=[
            pl.BlockSpec((bt, lq_tile, Dv_p), lambda i, j: (i, j, 0)),
            pl.BlockSpec((bt, lq_tile, Lk_p), lambda i, j: (i, j, 0)),
            pl.BlockSpec((bt, lq_tile, Lk_p), lambda i, j: (i, j, 0)),
        ],
    )

    h_p, attn_p, norm_p = pl.pallas_call(
        kernel,
        out_shape=out_shapes,
        grid_spec=grid_spec,
        compiler_params=pltpu.CompilerParams(
            dimension_semantics=("parallel", "parallel")),
        interpret=interpret,
    )(q_p, k_p, val_p, wq_p, bq_p, wk_p, v_p)

    return (h_p[:, :Lq, :Dv], attn_p[:, :Lq, :Lk], norm_p[:, :Lq, :Lk])


def bilinear_attention_ref(query, key, value, wq_t, bq, wk_t, v_row):
    wq = query @ wq_t + bq                      # [B,Lq,H]
    uh = key @ wk_t                             # [B,Lk,H]
    wquh = jnp.tanh(wq[:, :, None, :] + uh[:, None, :, :])
    attn = jnp.sum(wquh * v_row.reshape(1, 1, 1, -1), axis=-1)
    norm = jax.nn.softmax(attn, axis=-1)
    h = jnp.einsum('bqk,bkd->bqd', norm, value)
    return h, attn, norm


if __name__ == "__main__":
    B, Lq, Lk = 2, 8, 8
    query_size, key_size, value_size, hidden_size = 16, 16, 16, 32

    key0 = jax.random.PRNGKey(0)
    ks = jax.random.split(key0, 7)

    query = jax.random.normal(ks[0], (B, Lq, query_size), dtype=jnp.float32)
    key_t = jax.random.normal(ks[1], (B, Lk, key_size), dtype=jnp.float32)
    value = jax.random.normal(ks[2], (B, Lk, value_size), dtype=jnp.float32)

    # Deterministic parameter init (shapes match nn.Linear weights, stored transposed).
    wq_t = jax.random.normal(ks[3], (query_size, hidden_size), dtype=jnp.float32) * 0.1
    bq = jax.random.normal(ks[4], (hidden_size,), dtype=jnp.float32) * 0.1
    wk_t = jax.random.normal(ks[5], (key_size, hidden_size), dtype=jnp.float32) * 0.1
    v_row = jax.random.normal(ks[6], (1, hidden_size), dtype=jnp.float32) * 0.1

    h, attn, norm_attn = bilinear_attention(query, key_t, value, wq_t, bq, wk_t, v_row)
    jax.block_until_ready((h, attn, norm_attn))

    h_r, attn_r, norm_r = bilinear_attention_ref(query, key_t, value, wq_t, bq, wk_t, v_row)
    np.testing.assert_allclose(np.asarray(h), np.asarray(h_r), rtol=2e-3, atol=2e-3)
    np.testing.assert_allclose(np.asarray(attn), np.asarray(attn_r), rtol=2e-3, atol=2e-3)
    np.testing.assert_allclose(np.asarray(norm_attn), np.asarray(norm_r), rtol=2e-3, atol=2e-3)

    print("KERNEL_OK")
</pallas_src>

<mosaic_0001>
module attributes {stable_mosaic.version = 11 : i64} {
  func.func @_bilinear_attention_kernel(%arg0: i32, %arg1: i32, %arg2: memref<1x8x128xf32, #tpu.memory_space<vmem>>, %arg3: memref<1x128x128xf32, #tpu.memory_space<vmem>>, %arg4: memref<1x128x128xf32, #tpu.memory_space<vmem>>, %arg5: memref<128x32xf32, #tpu.memory_space<vmem>>, %arg6: memref<1x32xf32, #tpu.memory_space<vmem>>, %arg7: memref<128x32xf32, #tpu.memory_space<vmem>>, %arg8: memref<32x1xf32, #tpu.memory_space<vmem>>, %arg9: memref<1x8x128xf32, #tpu.memory_space<vmem>>, %arg10: memref<1x8x128xf32, #tpu.memory_space<vmem>>, %arg11: memref<1x8x128xf32, #tpu.memory_space<vmem>>) attributes {dimension_semantics = [#tpu.dimension_semantics<parallel>, #tpu.dimension_semantics<parallel>], iteration_bounds = array<i64: 2, 1>, scalar_prefetch = 0 : i64, scratch_operands = 0 : i64, tpu.core_type = #tpu.core_type<tc>, window_params = [{transform_indices = @transform_0, window_bounds = array<i64: 1, 8, 128>}, {transform_indices = @transform_1, window_bounds = array<i64: 1, 128, 128>}, {transform_indices = @transform_2, window_bounds = array<i64: 1, 128, 128>}, {pipeline_mode = #tpu.pipeline_mode<synchronous>, transform_indices = @transform_3, window_bounds = array<i64: 128, 32>}, {pipeline_mode = #tpu.pipeline_mode<synchronous>, transform_indices = @transform_4, window_bounds = array<i64: 1, 32>}, {pipeline_mode = #tpu.pipeline_mode<synchronous>, transform_indices = @transform_5, window_bounds = array<i64: 128, 32>}, {pipeline_mode = #tpu.pipeline_mode<synchronous>, transform_indices = @transform_6, window_bounds = array<i64: 32, 1>}, {transform_indices = @transform_7, window_bounds = array<i64: 1, 8, 128>}, {transform_indices = @transform_8, window_bounds = array<i64: 1, 8, 128>}, {transform_indices = @transform_9, window_bounds = array<i64: 1, 8, 128>}]} {
    %c0 = arith.constant 0 : index
    %c0_0 = arith.constant 0 : index
    %c0_1 = arith.constant 0 : index
    %0 = vector.load %arg2[%c0, %c0_0, %c0_1] : memref<1x8x128xf32, #tpu.memory_space<vmem>>, vector<1x8x128xf32>
    %1 = vector.shape_cast %0 : vector<1x8x128xf32> to vector<8x128xf32>
    %c0_2 = arith.constant 0 : index
    %c0_3 = arith.constant 0 : index
    %c0_4 = arith.constant 0 : index
    %2 = vector.load %arg3[%c0_2, %c0_3, %c0_4] : memref<1x128x128xf32, #tpu.memory_space<vmem>>, vector<1x128x128xf32>
    %3 = vector.shape_cast %2 : vector<1x128x128xf32> to vector<128x128xf32>
    %c0_5 = arith.constant 0 : index
    %c0_6 = arith.constant 0 : index
    %4 = vector.load %arg5[%c0_5, %c0_6] : memref<128x32xf32, #tpu.memory_space<vmem>>, vector<128x32xf32>
    %cst = arith.constant dense<0.000000e+00> : vector<8x32xf32>
    %5 = tpu.matmul %1, %4, %cst {dimension_numbers = #tpu.dot_dimension_numbers<[1], [0], [0], [1], [0, 0, 1, 1], [], []>} : vector<8x128xf32>, vector<128x32xf32>, vector<8x32xf32> -> vector<8x32xf32>
    %c0_7 = arith.constant 0 : index
    %c0_8 = arith.constant 0 : index
    %6 = vector.load %arg6[%c0_7, %c0_8] : memref<1x32xf32, #tpu.memory_space<vmem>>, vector<1x32xf32>
    %7 = vector.broadcast %6 : vector<1x32xf32> to vector<8x32xf32>
    %8 = arith.addf %5, %7 : vector<8x32xf32>
    %c0_9 = arith.constant 0 : index
    %c0_10 = arith.constant 0 : index
    %9 = vector.load %arg7[%c0_9, %c0_10] : memref<128x32xf32, #tpu.memory_space<vmem>>, vector<128x32xf32>
    %cst_11 = arith.constant dense<0.000000e+00> : vector<128x32xf32>
    %10 = tpu.matmul %3, %9, %cst_11 {dimension_numbers = #tpu.dot_dimension_numbers<[1], [0], [0], [1], [0, 0, 1, 1], [], []>} : vector<128x128xf32>, vector<128x32xf32>, vector<128x32xf32> -> vector<128x32xf32>
    %c0_12 = arith.constant 0 : index
    %c0_13 = arith.constant 0 : index
    %11 = vector.load %arg8[%c0_12, %c0_13] : memref<32x1xf32, #tpu.memory_space<vmem>>, vector<32x1xf32>
    %12 = tpu.iota {dimensions = array<i32: 1>} : vector<8x128xi32>
    %c8_i32 = arith.constant 8 : i32
    %13 = vector.broadcast %c8_i32 : i32 to vector<8x128xi32>
    %14 = arith.cmpi slt, %12, %13 : vector<8x128xi32>
    %cst_14 = arith.constant 0.000000e+00 : f32
    %cst_15 = arith.constant -1.000000e+30 : f32
    %15 = vector.broadcast %cst_14 : f32 to vector<8x128xf32>
    %16 = vector.broadcast %cst_15 : f32 to vector<8x128xf32>
    %17 = arith.select %14, %15, %16 : vector<8x128xi1>, vector<8x128xf32>
    %18 = tpu.transpose %8, [1, 0] : vector<8x32xf32> -> vector<32x8xf32>
    %19 = tpu.transpose %10, [1, 0] : vector<128x32xf32> -> vector<32x128xf32>
    %cst_16 = arith.constant 0.000000e+00 : f32
    %20 = vector.broadcast %cst_16 : f32 to vector<8x128xf32>
    %21 = vector.extract_strided_slice %18 {offsets = [0, 0], sizes = [8, 8], strides = [1, 1]} : vector<32x8xf32> to vector<8x8xf32>
    %22 = vector.shape_cast %21 : vector<8x8xf32> to vector<8x8x1xf32>
    %23 = vector.extract_strided_slice %19 {offsets = [0, 0], sizes = [8, 128], strides = [1, 1]} : vector<32x128xf32> to vector<8x128xf32>
    %24 = vector.shape_cast %23 : vector<8x128xf32> to vector<8x1x128xf32>
    %25 = vector.broadcast %22 : vector<8x8x1xf32> to vector<8x8x128xf32>
    %26 = vector.broadcast %24 : vector<8x1x128xf32> to vector<8x8x128xf32>
    %27 = arith.addf %25, %26 : vector<8x8x128xf32>
    %28 = math.tanh %27 : vector<8x8x128xf32>
    %29 = vector.extract_strided_slice %11 {offsets = [0, 0], sizes = [8, 1], strides = [1, 1]} : vector<32x1xf32> to vector<8x1xf32>
    %30 = vector.shape_cast %29 : vector<8x1xf32> to vector<8x1x1xf32>
    %31 = vector.broadcast %30 : vector<8x1x1xf32> to vector<8x8x128xf32>
    %32 = arith.mulf %28, %31 : vector<8x8x128xf32>
    %cst_17 = arith.constant dense<0.000000e+00> : vector<8x128xf32>
    %33 = vector.multi_reduction <add>, %32, %cst_17 [0] : vector<8x8x128xf32> to vector<8x128xf32>
    %34 = arith.addf %20, %33 : vector<8x128xf32>
    %35 = vector.extract_strided_slice %18 {offsets = [8, 0], sizes = [8, 8], strides = [1, 1]} : vector<32x8xf32> to vector<8x8xf32>
    %36 = vector.shape_cast %35 : vector<8x8xf32> to vector<8x8x1xf32>
    %37 = vector.extract_strided_slice %19 {offsets = [8, 0], sizes = [8, 128], strides = [1, 1]} : vector<32x128xf32> to vector<8x128xf32>
    %38 = vector.shape_cast %37 : vector<8x128xf32> to vector<8x1x128xf32>
    %39 = vector.broadcast %36 : vector<8x8x1xf32> to vector<8x8x128xf32>
    %40 = vector.broadcast %38 : vector<8x1x128xf32> to vector<8x8x128xf32>
    %41 = arith.addf %39, %40 : vector<8x8x128xf32>
    %42 = math.tanh %41 : vector<8x8x128xf32>
    %43 = vector.extract_strided_slice %11 {offsets = [8, 0], sizes = [8, 1], strides = [1, 1]} : vector<32x1xf32> to vector<8x1xf32>
    %44 = vector.shape_cast %43 : vector<8x1xf32> to vector<8x1x1xf32>
    %45 = vector.broadcast %44 : vector<8x1x1xf32> to vector<8x8x128xf32>
    %46 = arith.mulf %42, %45 : vector<8x8x128xf32>
    %cst_18 = arith.constant dense<0.000000e+00> : vector<8x128xf32>
    %47 = vector.multi_reduction <add>, %46, %cst_18 [0] : vector<8x8x128xf32> to vector<8x128xf32>
    %48 = arith.addf %34, %47 : vector<8x128xf32>
    %49 = vector.extract_strided_slice %18 {offsets = [16, 0], sizes = [8, 8], strides = [1, 1]} : vector<32x8xf32> to vector<8x8xf32>
    %50 = vector.shape_cast %49 : vector<8x8xf32> to vector<8x8x1xf32>
    %51 = vector.extract_strided_slice %19 {offsets = [16, 0], sizes = [8, 128], strides = [1, 1]} : vector<32x128xf32> to vector<8x128xf32>
    %52 = vector.shape_cast %51 : vector<8x128xf32> to vector<8x1x128xf32>
    %53 = vector.broadcast %50 : vector<8x8x1xf32> to vector<8x8x128xf32>
    %54 = vector.broadcast %52 : vector<8x1x128xf32> to vector<8x8x128xf32>
    %55 = arith.addf %53, %54 : vector<8x8x128xf32>
    %56 = math.tanh %55 : vector<8x8x128xf32>
    %57 = vector.extract_strided_slice %11 {offsets = [16, 0], sizes = [8, 1], strides = [1, 1]} : vector<32x1xf32> to vector<8x1xf32>
    %58 = vector.shape_cast %57 : vector<8x1xf32> to vector<8x1x1xf32>
    %59 = vector.broadcast %58 : vector<8x1x1xf32> to vector<8x8x128xf32>
    %60 = arith.mulf %56, %59 : vector<8x8x128xf32>
    %cst_19 = arith.constant dense<0.000000e+00> : vector<8x128xf32>
    %61 = vector.multi_reduction <add>, %60, %cst_19 [0] : vector<8x8x128xf32> to vector<8x128xf32>
    %62 = arith.addf %48, %61 : vector<8x128xf32>
    %63 = vector.extract_strided_slice %18 {offsets = [24, 0], sizes = [8, 8], strides = [1, 1]} : vector<32x8xf32> to vector<8x8xf32>
    %64 = vector.shape_cast %63 : vector<8x8xf32> to vector<8x8x1xf32>
    %65 = vector.extract_strided_slice %19 {offsets = [24, 0], sizes = [8, 128], strides = [1, 1]} : vector<32x128xf32> to vector<8x128xf32>
    %66 = vector.shape_cast %65 : vector<8x128xf32> to vector<8x1x128xf32>
    %67 = vector.broadcast %64 : vector<8x8x1xf32> to vector<8x8x128xf32>
    %68 = vector.broadcast %66 : vector<8x1x128xf32> to vector<8x8x128xf32>
    %69 = arith.addf %67, %68 : vector<8x8x128xf32>
    %70 = math.tanh %69 : vector<8x8x128xf32>
    %71 = vector.extract_strided_slice %11 {offsets = [24, 0], sizes = [8, 1], strides = [1, 1]} : vector<32x1xf32> to vector<8x1xf32>
    %72 = vector.shape_cast %71 : vector<8x1xf32> to vector<8x1x1xf32>
    %73 = vector.broadcast %72 : vector<8x1x1xf32> to vector<8x8x128xf32>
    %74 = arith.mulf %70, %73 : vector<8x8x128xf32>
    %cst_20 = arith.constant dense<0.000000e+00> : vector<8x128xf32>
    %75 = vector.multi_reduction <add>, %74, %cst_20 [0] : vector<8x8x128xf32> to vector<8x128xf32>
    %76 = arith.addf %62, %75 : vector<8x128xf32>
    %77 = arith.addf %76, %17 : vector<8x128xf32>
    %cst_21 = arith.constant dense<0xFF800000> : vector<8xf32>
    %78 = vector.multi_reduction <maximumf>, %77, %cst_21 [1] : vector<8x128xf32> to vector<8xf32>
    %79 = vector.shape_cast %78 : vector<8xf32> to vector<8x1xf32>
    %80 = vector.broadcast %79 : vector<8x1xf32> to vector<8x128xf32>
    %81 = arith.subf %77, %80 : vector<8x128xf32>
    %82 = math.exp %81 : vector<8x128xf32>
    %cst_22 = arith.constant dense<0.000000e+00> : vector<8xf32>
    %83 = vector.multi_reduction <add>, %82, %cst_22 [1] : vector<8x128xf32> to vector<8xf32>
    %84 = vector.shape_cast %83 : vector<8xf32> to vector<8x1xf32>
    %85 = tpu.reciprocal %84 : vector<8x1xf32> -> vector<8x1xf32>
    %86 = vector.broadcast %85 : vector<8x1xf32> to vector<8x128xf32>
    %87 = arith.mulf %82, %86 : vector<8x128xf32>
    %c0_23 = arith.constant 0 : index
    %c0_24 = arith.constant 0 : index
    %c0_25 = arith.constant 0 : index
    %88 = vector.load %arg4[%c0_23, %c0_24, %c0_25] : memref<1x128x128xf32, #tpu.memory_space<vmem>>, vector<1x128x128xf32>
    %89 = vector.shape_cast %88 : vector<1x128x128xf32> to vector<128x128xf32>
    %cst_26 = arith.constant dense<0.000000e+00> : vector<8x128xf32>
    %90 = tpu.matmul %87, %89, %cst_26 {dimension_numbers = #tpu.dot_dimension_numbers<[1], [0], [0], [1], [0, 0, 1, 1], [], []>} : vector<8x128xf32>, vector<128x128xf32>, vector<8x128xf32> -> vector<8x128xf32>
    %c0_27 = arith.constant 0 : index
    %c0_28 = arith.constant 0 : index
    %c0_29 = arith.constant 0 : index
    %91 = vector.load %arg9[%c0_27, %c0_28, %c0_29] : memref<1x8x128xf32, #tpu.memory_space<vmem>>, vector<1x8x128xf32>
    %92 = vector.shape_cast %91 : vector<1x8x128xf32> to vector<8x128xf32>
    %93 = vector.shape_cast %90 : vector<8x128xf32> to vector<1x8x128xf32>
    tpu.vector_store %arg9[%c0_27, %c0_28, %c0_29], %93 {strides = array<i32>} : memref<1x8x128xf32, #tpu.memory_space<vmem>>, vector<1x8x128xf32>,
    %c0_30 = arith.constant 0 : index
    %c0_31 = arith.constant 0 : index
    %c0_32 = arith.constant 0 : index
    %94 = vector.load %arg10[%c0_30, %c0_31, %c0_32] : memref<1x8x128xf32, #tpu.memory_space<vmem>>, vector<1x8x128xf32>
    %95 = vector.shape_cast %94 : vector<1x8x128xf32> to vector<8x128xf32>
    %96 = vector.shape_cast %76 : vector<8x128xf32> to vector<1x8x128xf32>
    tpu.vector_store %arg10[%c0_30, %c0_31, %c0_32], %96 {strides = array<i32>} : memref<1x8x128xf32, #tpu.memory_space<vmem>>, vector<1x8x128xf32>,
    %c0_33 = arith.constant 0 : index
    %c0_34 = arith.constant 0 : index
    %c0_35 = arith.constant 0 : index
    %97 = vector.load %arg11[%c0_33, %c0_34, %c0_35] : memref<1x8x128xf32, #tpu.memory_space<vmem>>, vector<1x8x128xf32>
    %98 = vector.shape_cast %97 : vector<1x8x128xf32> to vector<8x128xf32>
    %99 = vector.shape_cast %87 : vector<8x128xf32> to vector<1x8x128xf32>
    tpu.vector_store %arg11[%c0_33, %c0_34, %c0_35], %99 {strides = array<i32>} : memref<1x8x128xf32, #tpu.memory_space<vmem>>, vector<1x8x128xf32>,
    return
  }
  func.func @transform_0(%arg0: i32, %arg1: i32) -> (i32, i32, i32) {
    %c0_i32 = arith.constant 0 : i32
    %c0_i32_0 = arith.constant 0 : i32
    return %arg0, %arg1, %c0_i32 : i32, i32, i32
  }
  func.func @transform_1(%arg0: i32, %arg1: i32) -> (i32, i32, i32) {
    %c0_i32 = arith.constant 0 : i32
    %c0_i32_0 = arith.constant 0 : i32
    %c0_i32_1 = arith.constant 0 : i32
    return %arg0, %c0_i32, %c0_i32_0 : i32, i32, i32
  }
  func.func @transform_2(%arg0: i32, %arg1: i32) -> (i32, i32, i32) {
    %c0_i32 = arith.constant 0 : i32
    %c0_i32_0 = arith.constant 0 : i32
    %c0_i32_1 = arith.constant 0 : i32
    return %arg0, %c0_i32, %c0_i32_0 : i32, i32, i32
  }
  func.func @transform_3(%arg0: i32, %arg1: i32) -> (i32, i32) {
    %c0_i32 = arith.constant 0 : i32
    %c0_i32_0 = arith.constant 0 : i32
    %c0_i32_1 = arith.constant 0 : i32
    return %c0_i32, %c0_i32_0 : i32, i32
  }
  func.func @transform_4(%arg0: i32, %arg1: i32) -> (i32, i32) {
    %c0_i32 = arith.constant 0 : i32
    %c0_i32_0 = arith.constant 0 : i32
    %c0_i32_1 = arith.constant 0 : i32
    return %c0_i32, %c0_i32_0 : i32, i32
  }
  func.func @transform_5(%arg0: i32, %arg1: i32) -> (i32, i32) {
    %c0_i32 = arith.constant 0 : i32
    %c0_i32_0 = arith.constant 0 : i32
    %c0_i32_1 = arith.constant 0 : i32
    return %c0_i32, %c0_i32_0 : i32, i32
  }
  func.func @transform_6(%arg0: i32, %arg1: i32) -> (i32, i32) {
    %c0_i32 = arith.constant 0 : i32
    %c0_i32_0 = arith.constant 0 : i32
    %c0_i32_1 = arith.constant 0 : i32
    return %c0_i32, %c0_i32_0 : i32, i32
  }
  func.func @transform_7(%arg0: i32, %arg1: i32) -> (i32, i32, i32) {
    %c0_i32 = arith.constant 0 : i32
    %c0_i32_0 = arith.constant 0 : i32
    return %arg0, %arg1, %c0_i32 : i32, i32, i32
  }
  func.func @transform_8(%arg0: i32, %arg1: i32) -> (i32, i32, i32) {
    %c0_i32 = arith.constant 0 : i32
    %c0_i32_0 = arith.constant 0 : i32
    return %arg0, %arg1, %c0_i32 : i32, i32, i32
  }
  func.func @transform_9(%arg0: i32, %arg1: i32) -> (i32, i32, i32) {
    %c0_i32 = arith.constant 0 : i32
    %c0_i32_0 = arith.constant 0 : i32
    return %arg0, %arg1, %c0_i32 : i32, i32, i32
  }
}

</mosaic_0001>

<llo_original>
// kernel: tpu_custom_call.1
$region0: #{tpu_custom_call.1}
  #allocation0 [shape = 'u32[]', space=smem, size = 0x4, offset = 0x4, fixed_abs, tag = 'smem constant byte address 0x4 - core index']
  #allocation1 [shape = 'u32[144,128]{1,0:T(1,128)}', space=vmem, size = 0x12000, scoped, tag = 'internal scratch']
  %s0 = inlined_call_operand.vmem [shape: f32[2,8,128], index: 0, kind: input, shape index: {}]
  %s1 = inlined_call_operand.vmem [shape: f32[2,128,128], index: 1, kind: input, shape index: {}]
  %s2 = inlined_call_operand.hbm [shape: f32[2,128,128], index: 2, kind: input, shape index: {}]
  %s3 = inlined_call_operand.vmem [shape: f32[128,32], index: 3, kind: input, shape index: {}]
  %s4 = inlined_call_operand.vmem [shape: f32[1,32], index: 4, kind: input, shape index: {}]
  %s5 = inlined_call_operand.vmem [shape: f32[128,32], index: 5, kind: input, shape index: {}]
  %s6 = inlined_call_operand.vmem [shape: f32[32,1], index: 6, kind: input, shape index: {}]
  %s7 = inlined_call_operand.hbm [shape: f32[2,8,128], index: 7, kind: output, shape index: {0}]
  %s8 = inlined_call_operand.hbm [shape: f32[2,8,128], index: 8, kind: output, shape index: {1}]
  %s9 = inlined_call_operand.hbm [shape: f32[2,8,128], index: 9, kind: output, shape index: {2}]
  %10 = xla_tuple %s7, %s8, %s9
  %s11 = sld [smem:[#allocation0]]
  $region81: #{tpu_custom_call.1} parent=0
    _
  %s13 = ssub.s32 1, %s11
  %s14 = scalar_select 0, %s13, %s11
  $region1: #{tpu_custom_call.1} parent=0
    #allocation2 [shape = 'u8[131072]{0}', space=vmem, size = 0x20000, scoped, tag = 'input window, operand 2']
    #allocation3 [shape = 's32[2]{0}', space=sflag, size = 0x8, scoped, tag = 'scoped memory for tpu_custom_call.1']
    #allocation4 [shape = 's32[2]{0}', space=sflag, size = 0x8, scoped, tag = 'scoped memory for tpu_custom_call.1']
    #allocation5 [shape = 'u8[8192]{0}', space=vmem, size = 0x2000, scoped, tag = 'output window, operand 0']
    #allocation6 [shape = 'u8[8192]{0}', space=vmem, size = 0x2000, scoped, tag = 'output window, operand 1']
    #allocation7 [shape = 's32[2]{0}', space=sflag, size = 0x8, scoped, tag = 'scoped memory for tpu_custom_call.1']
    #allocation8 [shape = 'u8[8192]{0}', space=vmem, size = 0x2000, scoped, tag = 'output window, operand 2']
    %15 = vsyncpa [#allocation3], 0
    %s16 = scalar_lea.sflag [#allocation3], 1
    %17 = vsyncpa %s16, 0
    %18 = vsyncpa [#allocation4], 0
    %s19 = scalar_lea.sflag [#allocation4], 1
    %20 = vsyncpa %s19, 0
    %21 = vsyncpa [#allocation7], 0
    %s22 = scalar_lea.sflag [#allocation7], 1
    %23 = vsyncpa %s22, 0
    loop: start=0, step=1, limit=4
    $region2: #{tpu_custom_call.1} parent=1 // loop_pre_header
      _
    $region3: #{tpu_custom_call.1} parent=1 // loop_header
      %s25 = sphi 0, %s29
      %p26 = scmp.ge.s32.totalorder %s25, 4
      %s32 = sphi 0, %s44
      %s33 = sphi 0, %s40
      %s34 = sphi 0, %s32
      %s35 = sphi 0, %s33
      %s36 = sphi 0, %s34
      %s37 = sphi 0, %s35
      %s49 = sphi 0, %s51
      %s52 = sphi 0, %s49
      %s53 = sphi 0, %s52
      %s69 = sphi 0, %s53
      %s75 = sphi 0, %s77
      %s78 = sphi 0, %s75
      %s79 = sphi 0, %s78
      %s95 = sphi 0, %s79
      %s101 = sphi 0, %s103
      %s104 = sphi 0, %s101
      %s105 = sphi 0, %s104
      %s121 = sphi 0, %s105
      %s125 = sphi 0, %s125
      %s127 = sphi 0, %s125
      %s128 = sphi 0, %s127
      %s142 = sphi 0, %s128
      %s146 = sphi 0, %s146
      %s148 = sphi 0, %s146
      %s149 = sphi 0, %s148
      %s163 = sphi 0, %s149
      %s167 = sphi 0, %s167
      %s169 = sphi 0, %s167
      %s170 = sphi 0, %s169
      %s184 = sphi 0, %s170
      %s188 = sphi 0, %s188
      %s190 = sphi 0, %s188
      %s191 = sphi 0, %s190
      %s205 = sphi 0, %s191
      %s213 = sphi 0, %s215
      %s216 = sphi 0, %s213
      %s217 = sphi 0, %s216
      %s233 = sphi 0, %s217
      %s241 = sphi 0, %s243
      %s244 = sphi 0, %s241
      %s245 = sphi 0, %s244
      %s261 = sphi 0, %s245
      %s269 = sphi 0, %s271
      %s272 = sphi 0, %s269
      %s273 = sphi 0, %s272
      %s289 = sphi 0, %s273
    $region4: #{tpu_custom_call.1} parent=1 // loop_header_branch
      %28 = sbr.rel (%p26) target = $region8
    $region5: #{tpu_custom_call.1} parent=1 // loop_body
      %s30 = ssub.s32 %s25, 1
      %s31 = ssub.s32 %s25, 2
      %s38 = sadd.s32 1, %s33
      %p39 = scmp.ge.s32.totalorder %s38, 1
      %s40 = scalar_select %p39, 0, %s38
      %s41 = sadd.s32 1, %s32
      %s42 = scalar_select %p39, %s41, %s32
      %p43 = scmp.ge.s32.totalorder %s42, 2
      %s44 = scalar_select %p43, 0, %s42
      %s45 = ssub.s32 %s32, %s44
      %s46 = ssub.s32 %s33, %s40
      %s47 = sor.u32 %s45, %s46
      %p48 = scmp.eq.s32.totalorder %s47, 0
      %s50 = sadd.s32 %s49, 1
      %s51 = scalar_select %p48, %s49, %s50
      %p54 = pneg %p48
      %p55 = scmp.eq.s32.totalorder %s25, 1
      %p56 = por %p54, %p55
      %p57 = scmp.ne.s32.totalorder %s49, %s52
      %p58 = scmp.eq.s32.totalorder %s25, 0
      %p59 = por %p57, %p58
      %p60 = scmp.ne.s32.totalorder %s49, %s52
      %p61 = scmp.eq.s32.totalorder %s30, 1
      %p62 = por %p60, %p61
      %p63 = scmp.ne.s32.totalorder %s52, %s53
      %p64 = scmp.eq.s32.totalorder %s30, 0
      %p65 = por %p63, %p64
      %p66 = scmp.ne.s32.totalorder %s52, %s53
      %p67 = scmp.eq.s32.totalorder %s31, 1
      %p68 = por %p66, %p67
      %p70 = scmp.ne.s32.totalorder %s53, %s69
      %p71 = scmp.eq.s32.totalorder %s31, 0
      %p72 = por %p70, %p71
      %s73 = ssub.s32 %s32, %s44
      %p74 = scmp.eq.s32.totalorder %s73, 0
      %s76 = sadd.s32 %s75, 1
      %s77 = scalar_select %p74, %s75, %s76
      %p80 = pneg %p74
      %p81 = scmp.eq.s32.totalorder %s25, 1
      %p82 = por %p80, %p81
      %p83 = scmp.ne.s32.totalorder %s75, %s78
      %p84 = scmp.eq.s32.totalorder %s25, 0
      %p85 = por %p83, %p84
      %p86 = scmp.ne.s32.totalorder %s75, %s78
      %p87 = scmp.eq.s32.totalorder %s30, 1
      %p88 = por %p86, %p87
      %p89 = scmp.ne.s32.totalorder %s78, %s79
      %p90 = scmp.eq.s32.totalorder %s30, 0
      %p91 = por %p89, %p90
      %p92 = scmp.ne.s32.totalorder %s78, %s79
      %p93 = scmp.eq.s32.totalorder %s31, 1
      %p94 = por %p92, %p93
      %p96 = scmp.ne.s32.totalorder %s79, %s95
      %p97 = scmp.eq.s32.totalorder %s31, 0
      %p98 = por %p96, %p97
      %s99 = ssub.s32 %s32, %s44
      %p100 = scmp.eq.s32.totalorder %s99, 0
      %s102 = sadd.s32 %s101, 1
      %s103 = scalar_select %p100, %s101, %s102
      %p106 = pneg %p100
      %p107 = scmp.eq.s32.totalorder %s25, 1
      %p108 = por %p106, %p107
      %p109 = scmp.ne.s32.totalorder %s101, %s104
      %p110 = scmp.eq.s32.totalorder %s25, 0
      %p111 = por %p109, %p110
      %p112 = scmp.ne.s32.totalorder %s101, %s104
      %p113 = scmp.eq.s32.totalorder %s30, 1
      %p114 = por %p112, %p113
      %p115 = scmp.ne.s32.totalorder %s104, %s105
      %p116 = scmp.eq.s32.totalorder %s30, 0
      %p117 = por %p115, %p116
      %p118 = scmp.ne.s32.totalorder %s104, %s105
      %p119 = scmp.eq.s32.totalorder %s31, 1
      %p120 = por %p118, %p119
      %p122 = scmp.ne.s32.totalorder %s105, %s121
      %p123 = scmp.eq.s32.totalorder %s31, 0
      %p124 = por %p122, %p123
      %s126 = sadd.s32 %s125, 1
      %p129 = scmp.eq.s32.totalorder %s25, 1
      %p130 = scmp.ne.s32.totalorder %s125, %s127
      %p131 = scmp.eq.s32.totalorder %s25, 0
      %p132 = por %p130, %p131
      %p133 = scmp.ne.s32.totalorder %s125, %s127
      %p134 = scmp.eq.s32.totalorder %s30, 1
      %p135 = por %p133, %p134
      %p136 = scmp.ne.s32.totalorder %s127, %s128
      %p137 = scmp.eq.s32.totalorder %s30, 0
      %p138 = por %p136, %p137
      %p139 = scmp.ne.s32.totalorder %s127, %s128
      %p140 = scmp.eq.s32.totalorder %s31, 1
      %p141 = por %p139, %p140
      %p143 = scmp.ne.s32.totalorder %s128, %s142
      %p144 = scmp.eq.s32.totalorder %s31, 0
      %p145 = por %p143, %p144
      %s147 = sadd.s32 %s146, 1
      %p150 = scmp.eq.s32.totalorder %s25, 1
      %p151 = scmp.ne.s32.totalorder %s146, %s148
      %p152 = scmp.eq.s32.totalorder %s25, 0
      %p153 = por %p151, %p152
      %p154 = scmp.ne.s32.totalorder %s146, %s148
      %p155 = scmp.eq.s32.totalorder %s30, 1
      %p156 = por %p154, %p155
      %p157 = scmp.ne.s32.totalorder %s148, %s149
      %p158 = scmp.eq.s32.totalorder %s30, 0
      %p159 = por %p157, %p158
      %p160 = scmp.ne.s32.totalorder %s148, %s149
      %p161 = scmp.eq.s32.totalorder %s31, 1
      %p162 = por %p160, %p161
      %p164 = scmp.ne.s32.totalorder %s149, %s163
      %p165 = scmp.eq.s32.totalorder %s31, 0
      %p166 = por %p164, %p165
      %s168 = sadd.s32 %s167, 1
      %p171 = scmp.eq.s32.totalorder %s25, 1
      %p172 = scmp.ne.s32.totalorder %s167, %s169
      %p173 = scmp.eq.s32.totalorder %s25, 0
      %p174 = por %p172, %p173
      %p175 = scmp.ne.s32.totalorder %s167, %s169
      %p176 = scmp.eq.s32.totalorder %s30, 1
      %p177 = por %p175, %p176
      %p178 = scmp.ne.s32.totalorder %s169, %s170
      %p179 = scmp.eq.s32.totalorder %s30, 0
      %p180 = por %p178, %p179
      %p181 = scmp.ne.s32.totalorder %s169, %s170
      %p182 = scmp.eq.s32.totalorder %s31, 1
      %p183 = por %p181, %p182
      %p185 = scmp.ne.s32.totalorder %s170, %s184
      %p186 = scmp.eq.s32.totalorder %s31, 0
      %p187 = por %p185, %p186
      %s189 = sadd.s32 %s188, 1
      %p192 = scmp.eq.s32.totalorder %s25, 1
      %p193 = scmp.ne.s32.totalorder %s188, %s190
      %p194 = scmp.eq.s32.totalorder %s25, 0
      %p195 = por %p193, %p194
      %p196 = scmp.ne.s32.totalorder %s188, %s190
      %p197 = scmp.eq.s32.totalorder %s30, 1
      %p198 = por %p196, %p197
      %p199 = scmp.ne.s32.totalorder %s190, %s191
      %p200 = scmp.eq.s32.totalorder %s30, 0
      %p201 = por %p199, %p200
      %p202 = scmp.ne.s32.totalorder %s190, %s191
      %p203 = scmp.eq.s32.totalorder %s31, 1
      %p204 = por %p202, %p203
      %p206 = scmp.ne.s32.totalorder %s191, %s205
      %p207 = scmp.eq.s32.totalorder %s31, 0
      %p208 = por %p206, %p207
      %s209 = ssub.s32 %s32, %s44
      %s210 = ssub.s32 %s33, %s40
      %s211 = sor.u32 %s209, %s210
      %p212 = scmp.eq.s32.totalorder %s211, 0
      %s214 = sadd.s32 %s213, 1
      %s215 = scalar_select %p212, %s213, %s214
      %p218 = pneg %p212
      %p219 = scmp.eq.s32.totalorder %s25, 1
      %p220 = por %p218, %p219
      %p221 = scmp.ne.s32.totalorder %s213, %s216
      %p222 = scmp.eq.s32.totalorder %s25, 0
      %p223 = por %p221, %p222
      %p224 = scmp.ne.s32.totalorder %s213, %s216
      %p225 = scmp.eq.s32.totalorder %s30, 1
      %p226 = por %p224, %p225
      %p227 = scmp.ne.s32.totalorder %s216, %s217
      %p228 = scmp.eq.s32.totalorder %s30, 0
      %p229 = por %p227, %p228
      %p230 = scmp.ne.s32.totalorder %s216, %s217
      %p231 = scmp.eq.s32.totalorder %s31, 1
      %p232 = por %p230, %p231
      %p234 = scmp.ne.s32.totalorder %s217, %s233
      %p235 = scmp.eq.s32.totalorder %s31, 0
      %p236 = por %p234, %p235
      %s237 = ssub.s32 %s32, %s44
      %s238 = ssub.s32 %s33, %s40
      %s239 = sor.u32 %s237, %s238
      %p240 = scmp.eq.s32.totalorder %s239, 0
      %s242 = sadd.s32 %s241, 1
      %s243 = scalar_select %p240, %s241, %s242
      %p246 = pneg %p240
      %p247 = scmp.eq.s32.totalorder %s25, 1
      %p248 = por %p246, %p247
      %p249 = scmp.ne.s32.totalorder %s241, %s244
      %p250 = scmp.eq.s32.totalorder %s25, 0
      %p251 = por %p249, %p250
      %p252 = scmp.ne.s32.totalorder %s241, %s244
      %p253 = scmp.eq.s32.totalorder %s30, 1
      %p254 = por %p252, %p253
      %p255 = scmp.ne.s32.totalorder %s244, %s245
      %p256 = scmp.eq.s32.totalorder %s30, 0
      %p257 = por %p255, %p256
      %p258 = scmp.ne.s32.totalorder %s244, %s245
      %p259 = scmp.eq.s32.totalorder %s31, 1
      %p260 = por %p258, %p259
      %p262 = scmp.ne.s32.totalorder %s245, %s261
      %p263 = scmp.eq.s32.totalorder %s31, 0
      %p264 = por %p262, %p263
      %s265 = ssub.s32 %s32, %s44
      %s266 = ssub.s32 %s33, %s40
      %s267 = sor.u32 %s265, %s266
      %p268 = scmp.eq.s32.totalorder %s267, 0
      %s270 = sadd.s32 %s269, 1
      %s271 = scalar_select %p268, %s269, %s270
      %p274 = pneg %p268
      %p275 = scmp.eq.s32.totalorder %s25, 1
      %p276 = por %p274, %p275
      %p277 = scmp.ne.s32.totalorder %s269, %s272
      %p278 = scmp.eq.s32.totalorder %s25, 0
      %p279 = por %p277, %p278
      %p280 = scmp.ne.s32.totalorder %s269, %s272
      %p281 = scmp.eq.s32.totalorder %s30, 1
      %p282 = por %p280, %p281
      %p283 = scmp.ne.s32.totalorder %s272, %s273
      %p284 = scmp.eq.s32.totalorder %s30, 0
      %p285 = por %p283, %p284
      %p286 = scmp.ne.s32.totalorder %s272, %s273
      %p287 = scmp.eq.s32.totalorder %s31, 1
      %p288 = por %p286, %p287
      %p290 = scmp.ne.s32.totalorder %s273, %s289
      %p291 = scmp.eq.s32.totalorder %s31, 0
      %p292 = por %p290, %p291
      %p293 = scmp.le.s32.totalorder 1, %s25
      %p294 = scmp.lt.s32.totalorder %s25, 3
      %p295 = pnand %p293, %p294
      %p296 = pneg %p295
      // Predicated region
      $region9: #{tpu_custom_call.1} parent=5 // pred_check
        _
      $region10: #{tpu_custom_call.1} parent=5 // pred_check_branch
        %298 = sbr.rel (%p295) target = $region12
      $region11: #{tpu_custom_call.1} parent=5 // pred_region
        %s299 = ssub.s32 %s25, 1
        // Predicated region
        $region13: #{tpu_custom_call.1} parent=11 // pred_check
          %p300 = pneg %p138
        $region14: #{tpu_custom_call.1} parent=11 // pred_check_branch
          %302 = sbr.rel (%p300) target = $region16
        $region15: #{tpu_custom_call.1} parent=11 // pred_region
          _
        $region16: #{tpu_custom_call.1} parent=11 // pred_fallthru
          _
        // Predicated region
        $region17: #{tpu_custom_call.1} parent=11 // pred_check
          %p303 = pneg %p159
        $region18: #{tpu_custom_call.1} parent=11 // pred_check_branch
          %305 = sbr.rel (%p303) target = $region20
        $region19: #{tpu_custom_call.1} parent=11 // pred_region
          _
        $region20: #{tpu_custom_call.1} parent=11 // pred_fallthru
          _
        // Predicated region
        $region21: #{tpu_custom_call.1} parent=11 // pred_check
          %p306 = pneg %p180
        $region22: #{tpu_custom_call.1} parent=11 // pred_check_branch
          %308 = sbr.rel (%p306) target = $region24
        $region23: #{tpu_custom_call.1} parent=11 // pred_region
          _
        $region24: #{tpu_custom_call.1} parent=11 // pred_fallthru
          _
        // Predicated region
        $region25: #{tpu_custom_call.1} parent=11 // pred_check
          %p309 = pneg %p201
        $region26: #{tpu_custom_call.1} parent=11 // pred_check_branch
          %311 = sbr.rel (%p309) target = $region28
        $region27: #{tpu_custom_call.1} parent=11 // pred_region
          _
        $region28: #{tpu_custom_call.1} parent=11 // pred_fallthru
          _
      $region12: #{tpu_custom_call.1} parent=5 // pred_fallthru
        _
      %p312 = scmp.lt.s32.totalorder %s25, 2
      // Predicated region
      $region29: #{tpu_custom_call.1} parent=5 // pred_check
        %p313 = pneg %p312
      $region30: #{tpu_custom_call.1} parent=5 // pred_check_branch
        %315 = sbr.rel (%p313) target = $region32
      $region31: #{tpu_custom_call.1} parent=5 // pred_region
        // Predicated region
        $region33: #{tpu_custom_call.1} parent=31 // pred_check
          %p316 = pneg %p59
        $region34: #{tpu_custom_call.1} parent=31 // pred_check_branch
          %318 = sbr.rel (%p316) target = $region36
        $region35: #{tpu_custom_call.1} parent=31 // pred_region
          %p319 = scmp.lt.s32.totalorder %s32, 1
          %s320 = scalar_select %p319, %s32, 1
          %p321 = scmp.lt.s32.totalorder %s33, 0
          %s322 = scalar_select %p321, %s33, 0
          %s323 = sadd.s32 %s322, %s320
          %s324 = smul.addr %s323, 8
          %s325 = scalar_lea.vmem %s0, %s324
        $region36: #{tpu_custom_call.1} parent=31 // pred_fallthru
          _
        // Predicated region
        $region37: #{tpu_custom_call.1} parent=31 // pred_check
          %p326 = pneg %p85
        $region38: #{tpu_custom_call.1} parent=31 // pred_check_branch
          %328 = sbr.rel (%p326) target = $region40
        $region39: #{tpu_custom_call.1} parent=31 // pred_region
          %p329 = scmp.lt.s32.totalorder %s32, 1
          %s330 = scalar_select %p329, %s32, 1
          %s331 = smul.addr %s330, 16
          %s332 = smul.addr %s331, 8
          %s333 = scalar_lea.vmem %s1, %s332
        $region40: #{tpu_custom_call.1} parent=31 // pred_fallthru
          _
        // Predicated region
        $region41: #{tpu_custom_call.1} parent=31 // pred_check
          %p334 = pneg %p111
        $region42: #{tpu_custom_call.1} parent=31 // pred_check_branch
          %336 = sbr.rel (%p334) target = $region44
        $region43: #{tpu_custom_call.1} parent=31 // pred_region
          %s337 = sand.u32 %s101, 1
          %s338 = scalar_lea.sflag [#allocation3], %s337
          %s339 = sand.u32 %s101, 1
          %s340 = smul.addr %s339, 128
          %s341 = scalar_lea.vmem [#allocation2], %s340
          %s343 = ssub.s32 2048, 2048
          %344 = vsyncadd %s338, %s343
          %s345 = smul.addr %s32, 16
          %s346 = smul.addr %s345, 128
          %s347 = scalar_lea.hbm %s2, %s346
          %s348 = sshll.u32 %s341, 4
          %s349 = int_to_ptr.vmem [resolvable:$true] %s348
          %354 = dma.hbm_to_vmem [thread:$0]  %s347, 2048, %s349, %s338, 128, 128, 8
        $region44: #{tpu_custom_call.1} parent=31 // pred_fallthru
          _
      $region32: #{tpu_custom_call.1} parent=5 // pred_fallthru
        _
      %p355 = scmp.le.s32.totalorder 1, %s25
      %p356 = scmp.lt.s32.totalorder %s25, 3
      %p357 = pnand %p355, %p356
      %p358 = pneg %p357
      // Predicated region
      $region45: #{tpu_custom_call.1} parent=5 // pred_check
        _
      $region46: #{tpu_custom_call.1} parent=5 // pred_check_branch
        %360 = sbr.rel (%p357) target = $region48
      $region47: #{tpu_custom_call.1} parent=5 // pred_region
        %s361 = ssub.s32 %s25, 1
        %s362 = sand.u32 %s104, 1
        %s363 = scalar_lea.sflag [#allocation3], %s362
        %s364 = sand.u32 %s104, 1
        %s365 = smul.addr %s364, 128
        %s366 = scalar_lea.vmem [#allocation2], %s365
        // Predicated region
        $region49: #{tpu_custom_call.1} parent=47 // pred_check
          %p367 = pneg %p117
        $region50: #{tpu_custom_call.1} parent=47 // pred_check_branch
          %369 = sbr.rel (%p367) target = $region52
        $region51: #{tpu_custom_call.1} parent=47 // pred_region
          %370 = dma.done %s363, 2048
        $region52: #{tpu_custom_call.1} parent=47 // pred_fallthru
          _
        %p371 = scmp.lt.s32.totalorder %s34, 1
        %s372 = scalar_select %p371, %s34, 1
        %p373 = scmp.lt.s32.totalorder %s35, 0
        %s374 = scalar_select %p373, %s35, 0
        %s375 = sadd.s32 %s374, %s372
        %s376 = smul.addr %s375, 8
        %s377 = scalar_lea.vmem %s0, %s376
        %p378 = pneg %p65
        %p379 = pneg %p62
        %p380 = scmp.lt.s32.totalorder %s34, 1
        %s381 = scalar_select %p380, %s34, 1
        %s382 = smul.addr %s381, 16
        %s383 = smul.addr %s382, 8
        %s384 = scalar_lea.vmem %s1, %s383
        %p385 = pneg %p91
        %p386 = pneg %p88
        %s387 = sand.u32 %s104, 1
        %s388 = scalar_lea.sflag [#allocation3], %s387
        %s389 = sand.u32 %s104, 1
        %s390 = smul.addr %s389, 128
        %s391 = scalar_lea.vmem [#allocation2], %s390
        %p392 = pneg %p117
        %p393 = pneg %p114
        %p394 = pneg %p138
        %p395 = pneg %p135
        %p396 = pneg %p159
        %p397 = pneg %p156
        %p398 = pneg %p180
        %p399 = pneg %p177
        %p400 = pneg %p201
        %p401 = pneg %p198
        %p402 = pneg %p229
        %p403 = pneg %p226
        %s404 = sand.u32 %s216, 1
        %s405 = scalar_lea.sflag [#allocation4], %s404
        %s406 = sand.u32 %s216, 1
        %s407 = smul.addr %s406, 8
        %s408 = scalar_lea.vmem [#allocation5], %s407
        %p409 = pneg %p257
        %p410 = pneg %p254
        %s411 = sand.u32 %s30, 1
        %s412 = scalar_lea.sflag [#allocation7], %s411
        %s413 = sand.u32 %s244, 1
        %s414 = smul.addr %s413, 8
        %s415 = scalar_lea.vmem [#allocation6], %s414
        %p416 = pneg %p285
        %p417 = pneg %p282
        %s418 = sand.u32 %s30, 1
        %s419 = scalar_lea.sflag [#allocation7], %s418
        %s420 = sand.u32 %s272, 1
        %s421 = smul.addr %s420, 8
        %s422 = scalar_lea.vmem [#allocation8], %s421
        %p423 = scmp.lt.s32.totalorder %s34, 1
        %s424 = scalar_select %p423, %s34, 1
        %p425 = scmp.lt.s32.totalorder %s35, 0
        %s426 = scalar_select %p425, %s35, 0
        %s427 = sadd.s32 %s426, %s424
        %s428 = smul.addr %s427, 8
        %s429 = scalar_lea.vmem %s0, %s428
        %p430 = scmp.lt.s32.totalorder %s34, 1
        %s431 = scalar_select %p430, %s34, 1
        %s432 = smul.addr %s431, 16
        %s433 = smul.addr %s432, 8
        %s434 = scalar_lea.vmem %s1, %s433
        %v435 = vld [vmem:[%s429] sm:$0xff]
        %v436 = vld [vmem:[%s434] sm:$0xff]
        %v437 = vld [vmem:[%s434 + $0x8] sm:$0xff]
        %v438 = vld [vmem:[%s434 + $0x10] sm:$0xff]
        %v439 = vld [vmem:[%s434 + $0x18] sm:$0xff]
        %v440 = vld [vmem:[%s434 + $0x20] sm:$0xff]
        %v441 = vld [vmem:[%s434 + $0x28] sm:$0xff]
        %v442 = vld [vmem:[%s434 + $0x30] sm:$0xff]
        %v443 = vld [vmem:[%s434 + $0x38] sm:$0xff]
        %v444 = vld [vmem:[%s434 + $0x40] sm:$0xff]
        %v445 = vld [vmem:[%s434 + $0x48] sm:$0xff]
        %v446 = vld [vmem:[%s434 + $0x50] sm:$0xff]
        %v447 = vld [vmem:[%s434 + $0x58] sm:$0xff]
        %v448 = vld [vmem:[%s434 + $0x60] sm:$0xff]
        %v449 = vld [vmem:[%s434 + $0x68] sm:$0xff]
        %v450 = vld [vmem:[%s434 + $0x70] sm:$0xff]
        %v451 = vld [vmem:[%s434 + $0x78] sm:$0xff]
        %v452 = vld [vmem:[%s3] sm:$0xff]
        %v453 = vld [vmem:[%s3 + $0x8] sm:$0xff]
        %v454 = vld [vmem:[%s3 + $0x10] sm:$0xff]
        %v455 = vld [vmem:[%s3 + $0x18] sm:$0xff]
        %v456 = vld [vmem:[%s3 + $0x20] sm:$0xff]
        %v457 = vld [vmem:[%s3 + $0x28] sm:$0xff]
        %v458 = vld [vmem:[%s3 + $0x30] sm:$0xff]
        %v459 = vld [vmem:[%s3 + $0x38] sm:$0xff]
        %v460 = vld [vmem:[%s3 + $0x40] sm:$0xff]
        %v461 = vld [vmem:[%s3 + $0x48] sm:$0xff]
        %v462 = vld [vmem:[%s3 + $0x50] sm:$0xff]
        %v463 = vld [vmem:[%s3 + $0x58] sm:$0xff]
        %v464 = vld [vmem:[%s3 + $0x60] sm:$0xff]
        %v465 = vld [vmem:[%s3 + $0x68] sm:$0xff]
        %v466 = vld [vmem:[%s3 + $0x70] sm:$0xff]
        %v467 = vld [vmem:[%s3 + $0x78] sm:$0xff]
        %v468 = vld [vmem:[%s4] sm:$0x1]
        %v470 = vlaneseq
        %v471 = vshrl.u32 %v470, 7
        %v472 = vsub.s32 0, %v471
        %v473 = vrot.slane %v468, %v472
        %475 = vmatprep.subr.mxu0 0.0
        %476 = vmatpush1.msra.mxu0 %v452
        %477 = vmatprep.subr.mxu0 0.0
        %478 = vmatpush1.msra.mxu0 %v453
        %479 = vmatprep.subr.mxu0 0.0
        %480 = vmatpush1.msra.mxu0 %v454
        %481 = vmatprep.subr.mxu0 0.0
        %482 = vmatpush1.msra.mxu0 %v455
        %483 = vmatprep.subr.mxu0 0.0
        %484 = vmatpush1.msra.mxu0 %v456
        %485 = vmatprep.subr.mxu0 0.0
        %486 = vmatpush1.msra.mxu0 %v457
        %487 = vmatprep.subr.mxu0 0.0
        %488 = vmatpush1.msra.mxu0 %v458
        %489 = vmatprep.subr.mxu0 0.0
        %490 = vmatpush1.msra.mxu0 %v459
        %491 = vmatprep.subr.mxu0 0.0
        %492 = vmatpush1.msra.mxu0 %v460
        %493 = vmatprep.subr.mxu0 0.0
        %494 = vmatpush1.msra.mxu0 %v461
        %495 = vmatprep.subr.mxu0 0.0
        %496 = vmatpush1.msra.mxu0 %v462
        %497 = vmatprep.subr.mxu0 0.0
        %498 = vmatpush1.msra.mxu0 %v463
        %499 = vmatprep.subr.mxu0 0.0
        %500 = vmatpush1.msra.mxu0 %v464
        %501 = vmatprep.subr.mxu0 0.0
        %502 = vmatpush1.msra.mxu0 %v465
        %503 = vmatprep.subr.mxu0 0.0
        %504 = vmatpush1.msra.mxu0 %v466
        %505 = vmatprep.subr.mxu0 0.0
        %506 = vmatpush1.msra.mxu0 %v467
        %507 = vmatprep.subr.mxu0 0.0
        %508 = vmatpush1.msra.mxu0 0.0
        %509 = vmatprep.subr.mxu0 0.0
        %510 = vmatpush1.msra.mxu0 0.0
        %511 = vmatprep.subr.mxu0 0.0
        %512 = vmatpush1.msra.mxu0 0.0
        %513 = vmatprep.subr.mxu0 0.0
        %514 = vmatpush1.msra.mxu0 0.0
        %515 = vmatprep.subr.mxu0 0.0
        %516 = vmatpush1.msra.mxu0 0.0
        %517 = vmatprep.subr.mxu0 0.0
        %518 = vmatpush1.msra.mxu0 0.0
        %519 = vmatprep.subr.mxu0 0.0
        %520 = vmatpush1.msra.mxu0 0.0
        %521 = vmatprep.subr.mxu0 0.0
        %522 = vmatpush1.msra.mxu0 0.0
        %523 = vmatprep.subr.mxu0 0.0
        %524 = vmatpush1.msra.mxu0 0.0
        %525 = vmatprep.subr.mxu0 0.0
        %526 = vmatpush1.msra.mxu0 0.0
        %527 = vmatprep.subr.mxu0 0.0
        %528 = vmatpush1.msra.mxu0 0.0
        %529 = vmatprep.subr.mxu0 0.0
        %530 = vmatpush1.msra.mxu0 0.0
        %531 = vmatprep.subr.mxu0 0.0
        %532 = vmatpush1.msra.mxu0 0.0
        %533 = vmatprep.subr.mxu0 0.0
        %534 = vmatpush1.msra.mxu0 0.0
        %535 = vmatprep.subr.mxu0 0.0
        %536 = vmatpush1.msra.mxu0 0.0
        %537 = vmatprep.subr.mxu0 0.0
        %538 = vmatpush1.msra.mxu0 0.0
        %539 = vmatprep.mubr.f32.mxu0 0.0
        %540 = vmatmul.mubr.f32.gmra.mrb[0].mxu0 %v435
        %v541 = vpop.f32.mrb[0].mxu0
        %v542 = vadd.f32 %v473, %v541
        %v543 = vpop.f32.mrb[0].mxu0
        %544 = vdwg.mxu0
        %v545 = vld [vmem:[%s5] sm:$0xff]
        %v546 = vld [vmem:[%s5 + $0x8] sm:$0xff]
        %v547 = vld [vmem:[%s5 + $0x10] sm:$0xff]
        %v548 = vld [vmem:[%s5 + $0x18] sm:$0xff]
        %v549 = vld [vmem:[%s5 + $0x20] sm:$0xff]
        %v550 = vld [vmem:[%s5 + $0x28] sm:$0xff]
        %v551 = vld [vmem:[%s5 + $0x30] sm:$0xff]
        %v552 = vld [vmem:[%s5 + $0x38] sm:$0xff]
        %v553 = vld [vmem:[%s5 + $0x40] sm:$0xff]
        %v554 = vld [vmem:[%s5 + $0x48] sm:$0xff]
        %v555 = vld [vmem:[%s5 + $0x50] sm:$0xff]
        %v556 = vld [vmem:[%s5 + $0x58] sm:$0xff]
        %v557 = vld [vmem:[%s5 + $0x60] sm:$0xff]
        %v558 = vld [vmem:[%s5 + $0x68] sm:$0xff]
        %v559 = vld [vmem:[%s5 + $0x70] sm:$0xff]
        %v560 = vld [vmem:[%s5 + $0x78] sm:$0xff]
        %561 = vmatprep.subr.mxu0 0.0
        %562 = vmatpush1.msra.mxu0 %v545
        %563 = vmatprep.subr.mxu0 0.0
        %564 = vmatpush1.msra.mxu0 %v546
        %565 = vmatprep.subr.mxu0 0.0
        %566 = vmatpush1.msra.mxu0 %v547
        %567 = vmatprep.subr.mxu0 0.0
        %568 = vmatpush1.msra.mxu0 %v548
        %569 = vmatprep.subr.mxu0 0.0
        %570 = vmatpush1.msra.mxu0 %v549
        %571 = vmatprep.subr.mxu0 0.0
        %572 = vmatpush1.msra.mxu0 %v550
        %573 = vmatprep.subr.mxu0 0.0
        %574 = vmatpush1.msra.mxu0 %v551
        %575 = vmatprep.subr.mxu0 0.0
        %576 = vmatpush1.msra.mxu0 %v552
        %577 = vmatprep.subr.mxu0 0.0
        %578 = vmatpush1.msra.mxu0 %v553
        %579 = vmatprep.subr.mxu0 0.0
        %580 = vmatpush1.msra.mxu0 %v554
        %581 = vmatprep.subr.mxu0 0.0
        %582 = vmatpush1.msra.mxu0 %v555
        %583 = vmatprep.subr.mxu0 0.0
        %584 = vmatpush1.msra.mxu0 %v556
        %585 = vmatprep.subr.mxu0 0.0
        %586 = vmatpush1.msra.mxu0 %v557
        %587 = vmatprep.subr.mxu0 0.0
        %588 = vmatpush1.msra.mxu0 %v558
        %589 = vmatprep.subr.mxu0 0.0
        %590 = vmatpush1.msra.mxu0 %v559
        %591 = vmatprep.subr.mxu0 0.0
        %592 = vmatpush1.msra.mxu0 %v560
        %593 = vmatprep.subr.mxu0 0.0
        %594 = vmatpush1.msra.mxu0 0.0
        %595 = vmatprep.subr.mxu0 0.0
        %596 = vmatpush1.msra.mxu0 0.0
        %597 = vmatprep.subr.mxu0 0.0
        %598 = vmatpush1.msra.mxu0 0.0
        %599 = vmatprep.subr.mxu0 0.0
        %600 = vmatpush1.msra.mxu0 0.0
        %601 = vmatprep.subr.mxu0 0.0
        %602 = vmatpush1.msra.mxu0 0.0
        %603 = vmatprep.subr.mxu0 0.0
        %604 = vmatpush1.msra.mxu0 0.0
        %605 = vmatprep.subr.mxu0 0.0
        %606 = vmatpush1.msra.mxu0 0.0
        %607 = vmatprep.subr.mxu0 0.0
        %608 = vmatpush1.msra.mxu0 0.0
        %609 = vmatprep.subr.mxu0 0.0
        %610 = vmatpush1.msra.mxu0 0.0
        %611 = vmatprep.subr.mxu0 0.0
        %612 = vmatpush1.msra.mxu0 0.0
        %613 = vmatprep.subr.mxu0 0.0
        %614 = vmatpush1.msra.mxu0 0.0
        %615 = vmatprep.subr.mxu0 0.0
        %616 = vmatpush1.msra.mxu0 0.0
        %617 = vmatprep.subr.mxu0 0.0
        %618 = vmatpush1.msra.mxu0 0.0
        %619 = vmatprep.subr.mxu0 0.0
        %620 = vmatpush1.msra.mxu0 0.0
        %621 = vmatprep.subr.mxu0 0.0
        %622 = vmatpush1.msra.mxu0 0.0
        %623 = vmatprep.subr.mxu0 0.0
        %624 = vmatpush1.msra.mxu0 0.0
        %625 = vmatprep.mubr.f32.mxu0 0.0
        %626 = vmatmul.mubr.f32.gmra.mrb[0].mxu0 %v436
        %v627 = vpop.f32.mrb[0].mxu0
        %v628 = vadd.f32 0.0, %v627
        %v629 = vpop.f32.mrb[0].mxu0
        %630 = vmatprep.mubr.f32.mxu0 0.0
        %631 = vmatmul.mubr.f32.gmra.mrb[0].mxu0 %v437
        %v632 = vpop.f32.mrb[0].mxu0
        %v633 = vadd.f32 0.0, %v632
        %v634 = vpop.f32.mrb[0].mxu0
        %635 = vmatprep.mubr.f32.mxu0 0.0
        %636 = vmatmul.mubr.f32.gmra.mrb[0].mxu0 %v438
        %v637 = vpop.f32.mrb[0].mxu0
        %v638 = vadd.f32 0.0, %v637
        %v639 = vpop.f32.mrb[0].mxu0
        %640 = vmatprep.mubr.f32.mxu0 0.0
        %641 = vmatmul.mubr.f32.gmra.mrb[0].mxu0 %v439
        %v642 = vpop.f32.mrb[0].mxu0
        %v643 = vadd.f32 0.0, %v642
        %v644 = vpop.f32.mrb[0].mxu0
        %645 = vmatprep.mubr.f32.mxu0 0.0
        %646 = vmatmul.mubr.f32.gmra.mrb[0].mxu0 %v440
        %v647 = vpop.f32.mrb[0].mxu0
        %v648 = vadd.f32 0.0, %v647
        %v649 = vpop.f32.mrb[0].mxu0
        %650 = vmatprep.mubr.f32.mxu0 0.0
        %651 = vmatmul.mubr.f32.gmra.mrb[0].mxu0 %v441
        %v652 = vpop.f32.mrb[0].mxu0
        %v653 = vadd.f32 0.0, %v652
        %v654 = vpop.f32.mrb[0].mxu0
        %655 = vmatprep.mubr.f32.mxu0 0.0
        %656 = vmatmul.mubr.f32.gmra.mrb[0].mxu0 %v442
        %v657 = vpop.f32.mrb[0].mxu0
        %v658 = vadd.f32 0.0, %v657
        %v659 = vpop.f32.mrb[0].mxu0
        %660 = vmatprep.mubr.f32.mxu0 0.0
        %661 = vmatmul.mubr.f32.gmra.mrb[0].mxu0 %v443
        %v662 = vpop.f32.mrb[0].mxu0
        %v663 = vadd.f32 0.0, %v662
        %v664 = vpop.f32.mrb[0].mxu0
        %665 = vmatprep.mubr.f32.mxu0 0.0
        %666 = vmatmul.mubr.f32.gmra.mrb[0].mxu0 %v444
        %v667 = vpop.f32.mrb[0].mxu0
        %v668 = vadd.f32 0.0, %v667
        %v669 = vpop.f32.mrb[0].mxu0
        %670 = vmatprep.mubr.f32.mxu0 0.0
        %671 = vmatmul.mubr.f32.gmra.mrb[0].mxu0 %v445
        %v672 = vpop.f32.mrb[0].mxu0
        %v673 = vadd.f32 0.0, %v672
        %v674 = vpop.f32.mrb[0].mxu0
        %675 = vmatprep.mubr.f32.mxu0 0.0
        %676 = vmatmul.mubr.f32.gmra.mrb[0].mxu0 %v446
        %v677 = vpop.f32.mrb[0].mxu0
        %v678 = vadd.f32 0.0, %v677
        %v679 = vpop.f32.mrb[0].mxu0
        %680 = vmatprep.mubr.f32.mxu0 0.0
        %681 = vmatmul.mubr.f32.gmra.mrb[0].mxu0 %v447
        %v682 = vpop.f32.mrb[0].mxu0
        %v683 = vadd.f32 0.0, %v682
        %v684 = vpop.f32.mrb[0].mxu0
        %685 = vmatprep.mubr.f32.mxu0 0.0
        %686 = vmatmul.mubr.f32.gmra.mrb[0].mxu0 %v448
        %v687 = vpop.f32.mrb[0].mxu0
        %v688 = vadd.f32 0.0, %v687
        %v689 = vpop.f32.mrb[0].mxu0
        %690 = vmatprep.mubr.f32.mxu0 0.0
        %691 = vmatmul.mubr.f32.gmra.mrb[0].mxu0 %v449
        %v692 = vpop.f32.mrb[0].mxu0
        %v693 = vadd.f32 0.0, %v692
        %v694 = vpop.f32.mrb[0].mxu0
        %695 = vmatprep.mubr.f32.mxu0 0.0
        %696 = vmatmul.mubr.f32.gmra.mrb[0].mxu0 %v450
        %v697 = vpop.f32.mrb[0].mxu0
        %v698 = vadd.f32 0.0, %v697
        %v699 = vpop.f32.mrb[0].mxu0
        %700 = vmatprep.mubr.f32.mxu0 0.0
        %701 = vmatmul.mubr.f32.gmra.mrb[0].mxu0 %v451
        %v702 = vpop.f32.mrb[0].mxu0
        %v703 = vadd.f32 0.0, %v702
        %v704 = vpop.f32.mrb[0].mxu0
        %705 = vdwg.mxu0
        %v706 = vld [vmem:[%s6] sm:$0xff]
        %v707 = vld [vmem:[%s6 + $0x8] sm:$0xff]
        %v708 = vld [vmem:[%s6 + $0x10] sm:$0xff]
        %v709 = vld [vmem:[%s6 + $0x18] sm:$0xff]
        %v710 = vlaneseq
        %v711 = vand.u32 %v710, 127
        %vm712 = vcmp.lt.s32.totalorder %v711, 8
        %v713 = vsel %vm712, 0.0, -1e+30
        %714 = vxpose.xlu0.b32.start [1/16] %v542, 128
        %715 = vxpose.xlu0.b32.cont [2/16] 0.0, 128
        %716 = vxpose.xlu0.b32.cont [3/16] 0.0, 128
        %717 = vxpose.xlu0.b32.cont [4/16] 0.0, 128
        %718 = vxpose.xlu0.b32.cont [5/16] 0.0, 128
        %719 = vxpose.xlu0.b32.cont [6/16] 0.0, 128
        %720 = vxpose.xlu0.b32.cont [7/16] 0.0, 128
        %721 = vxpose.xlu0.b32.cont [8/16] 0.0, 128
        %722 = vxpose.xlu0.b32.cont [9/16] 0.0, 128
        %723 = vxpose.xlu0.b32.cont [10/16] 0.0, 128
        %724 = vxpose.xlu0.b32.cont [11/16] 0.0, 128
        %725 = vxpose.xlu0.b32.cont [12/16] 0.0, 128
        %726 = vxpose.xlu0.b32.cont [13/16] 0.0, 128
        %727 = vxpose.xlu0.b32.cont [14/16] 0.0, 128
        %728 = vxpose.xlu0.b32.cont [15/16] 0.0, 128
        %729 = vxpose.xlu0.b32.end [16/16] 0.0, 128
        %v730 = vpop.trf.xlu0
        %v731 = vpop.trf.xlu0
        %v732 = vpop.trf.xlu0
        %v733 = vpop.trf.xlu0
        %v734 = vpop.trf.xlu0
        %v735 = vpop.trf.xlu0
        %v736 = vpop.trf.xlu0
        %v737 = vpop.trf.xlu0
        %v738 = vpop.trf.xlu0
        %v739 = vpop.trf.xlu0
        %v740 = vpop.trf.xlu0
        %v741 = vpop.trf.xlu0
        %v742 = vpop.trf.xlu0
        %v743 = vpop.trf.xlu0
        %v744 = vpop.trf.xlu0
        %v745 = vpop.trf.xlu0
        %746 = vxpose.xlu0.b32.start [1/16] %v628, 128
        %747 = vxpose.xlu0.b32.cont [2/16] %v633, 128
        %748 = vxpose.xlu0.b32.cont [3/16] %v638, 128
        %749 = vxpose.xlu0.b32.cont [4/16] %v643, 128
        %750 = vxpose.xlu0.b32.cont [5/16] %v648, 128
        %751 = vxpose.xlu0.b32.cont [6/16] %v653, 128
        %752 = vxpose.xlu0.b32.cont [7/16] %v658, 128
        %753 = vxpose.xlu0.b32.cont [8/16] %v663, 128
        %754 = vxpose.xlu0.b32.cont [9/16] %v668, 128
        %755 = vxpose.xlu0.b32.cont [10/16] %v673, 128
        %756 = vxpose.xlu0.b32.cont [11/16] %v678, 128
        %757 = vxpose.xlu0.b32.cont [12/16] %v683, 128
        %758 = vxpose.xlu0.b32.cont [13/16] %v688, 128
        %759 = vxpose.xlu0.b32.cont [14/16] %v693, 128
        %760 = vxpose.xlu0.b32.cont [15/16] %v698, 128
        %761 = vxpose.xlu0.b32.end [16/16] %v703, 128
        %v762 = vpop.trf.xlu0
        %v763 = vpop.trf.xlu0
        %v764 = vpop.trf.xlu0
        %v765 = vpop.trf.xlu0
        %v766 = vpop.trf.xlu0
        %v767 = vpop.trf.xlu0
        %v768 = vpop.trf.xlu0
        %v769 = vpop.trf.xlu0
        %v770 = vpop.trf.xlu0
        %v771 = vpop.trf.xlu0
        %v772 = vpop.trf.xlu0
        %v773 = vpop.trf.xlu0
        %v774 = vpop.trf.xlu0
        %v775 = vpop.trf.xlu0
        %v776 = vpop.trf.xlu0
        %v777 = vpop.trf.xlu0
        %v778 = vlaneseq
        %v779 = vshrl.u32 %v778, 7
        %v780 = vsub.s32 0, %v779
        %v781 = vrot.slane %v730, %v780
        %783 = vbcast.lane.b32.xlu0 %v781, 256
        %v784 = vpop.permute.xlu0 %783
        %v785 = vlaneseq
        %v786 = vshrl.u32 %v785, 7
        %v787 = vsub.s32 1, %v786
        %v788 = vrot.slane %v730, %v787
        %790 = vbcast.lane.b32.xlu0 %v788, 256
        %v791 = vpop.permute.xlu0 %790
        %v792 = vlaneseq
        %v793 = vshrl.u32 %v792, 7
        %v794 = vsub.s32 2, %v793
        %v795 = vrot.slane %v730, %v794
        %797 = vbcast.lane.b32.xlu0 %v795, 256
        %v798 = vpop.permute.xlu0 %797
        %v799 = vlaneseq
        %v800 = vshrl.u32 %v799, 7
        %v801 = vsub.s32 3, %v800
        %v802 = vrot.slane %v730, %v801
        %804 = vbcast.lane.b32.xlu0 %v802, 256
        %v805 = vpop.permute.xlu0 %804
        %v806 = vlaneseq
        %v807 = vshrl.u32 %v806, 7
        %v808 = vsub.s32 4, %v807
        %v809 = vrot.slane %v730, %v808
        %811 = vbcast.lane.b32.xlu0 %v809, 256
        %v812 = vpop.permute.xlu0 %811
        %v813 = vlaneseq
        %v814 = vshrl.u32 %v813, 7
        %v815 = vsub.s32 5, %v814
        %v816 = vrot.slane %v730, %v815
        %818 = vbcast.lane.b32.xlu0 %v816, 256
        %v819 = vpop.permute.xlu0 %818
        %v820 = vlaneseq
        %v821 = vshrl.u32 %v820, 7
        %v822 = vsub.s32 6, %v821
        %v823 = vrot.slane %v730, %v822
        %825 = vbcast.lane.b32.xlu0 %v823, 256
        %v826 = vpop.permute.xlu0 %825
        %v827 = vlaneseq
        %v828 = vshrl.u32 %v827, 7
        %v829 = vsub.s32 7, %v828
        %v830 = vrot.slane %v730, %v829
        %832 = vbcast.lane.b32.xlu0 %v830, 256
        %v833 = vpop.permute.xlu0 %832
        %v835 = vcombine.high %v762, %v762
        %v837 = vunpack.c.l.s4 1966171168
        %v838 = vunpack.c.0.s8 %v837
        %v839 = vlaneseq
        %v840 = vshrl.u32 %v839, 7
        %v841 = vsub.s32 %v838, %v840
        %v842 = vrot.slane %v762, %v841
        %v844 = vunpack.c.l.s4 1966171168
        %v845 = vunpack.c.0.s8 %v844
        %v846 = vlaneseq
        %v847 = vshrl.u32 %v846, 7
        %v848 = vsub.s32 %v845, %v847
        %v849 = vrot.slane %v835, %v848
        %v850 = vcombine.high %v842, %v842
        %v851 = vcombine.high %v849, %v849
        %v853 = vunpack.c.l.s4 1966171168
        %v854 = vunpack.c.0.s8 %v853
        %v855 = vlaneseq
        %v856 = vshrl.u32 %v855, 7
        %v857 = vsub.s32 %v854, %v856
        %v858 = vrot.slane %v842, %v857
        %v860 = vunpack.c.l.s4 1966171168
        %v861 = vunpack.c.0.s8 %v860
        %v862 = vlaneseq
        %v863 = vshrl.u32 %v862, 7
        %v864 = vsub.s32 %v861, %v863
        %v865 = vrot.slane %v849, %v864
        %v867 = vunpack.c.l.s4 1966171168
        %v868 = vunpack.c.0.s8 %v867
        %v869 = vlaneseq
        %v870 = vshrl.u32 %v869, 7
        %v871 = vsub.s32 %v868, %v870
        %v872 = vrot.slane %v850, %v871
        %v874 = vunpack.c.l.s4 1966171168
        %v875 = vunpack.c.0.s8 %v874
        %v876 = vlaneseq
        %v877 = vshrl.u32 %v876, 7
        %v878 = vsub.s32 %v875, %v877
        %v879 = vrot.slane %v851, %v878
        %v880 = vcombine.high %v858, %v858
        %v881 = vcombine.high %v865, %v865
        %v882 = vcombine.high %v872, %v872
        %v883 = vcombine.high %v879, %v879
        %v884 = vlaneseq
        %v885 = vshrl.u32 %v884, 7
        %v886 = vsub.s32 0, %v885
        %v887 = vrot.slane %v858, %v886
        %v888 = vlaneseq
        %v889 = vshrl.u32 %v888, 7
        %v890 = vsub.s32 0, %v889
        %v891 = vrot.slane %v872, %v890
        %v892 = vlaneseq
        %v893 = vshrl.u32 %v892, 7
        %v894 = vsub.s32 0, %v893
        %v895 = vrot.slane %v880, %v894
        %v896 = vlaneseq
        %v897 = vshrl.u32 %v896, 7
        %v898 = vsub.s32 0, %v897
        %v899 = vrot.slane %v882, %v898
        %v900 = vlaneseq
        %v901 = vshrl.u32 %v900, 7
        %v902 = vsub.s32 0, %v901
        %v903 = vrot.slane %v865, %v902
        %v904 = vlaneseq
        %v905 = vshrl.u32 %v904, 7
        %v906 = vsub.s32 0, %v905
        %v907 = vrot.slane %v879, %v906
        %v908 = vlaneseq
        %v909 = vshrl.u32 %v908, 7
        %v910 = vsub.s32 0, %v909
        %v911 = vrot.slane %v881, %v910
        %v912 = vlaneseq
        %v913 = vshrl.u32 %v912, 7
        %v914 = vsub.s32 0, %v913
        %v915 = vrot.slane %v883, %v914
        %v924 = vadd.f32 %v784, %v887
        %v925 = vadd.f32 %v791, %v891
        %v926 = vadd.f32 %v798, %v895
        %v927 = vadd.f32 %v805, %v899
        %v928 = vadd.f32 %v812, %v903
        %v929 = vadd.f32 %v819, %v907
        %v930 = vadd.f32 %v826, %v911
        %v931 = vadd.f32 %v833, %v915
        %v932 = vtanh.pop %v924
        %v933 = vtanh.pop %v925
        %v934 = vtanh.pop %v926
        %v935 = vtanh.pop %v927
        %v936 = vtanh.pop %v928
        %v937 = vtanh.pop %v929
        %v938 = vtanh.pop %v930
        %v939 = vtanh.pop %v931
        %v941 = vcombine.high %v706, %v706
        %v943 = vunpack.c.l.s4 1966171168
        %v944 = vunpack.c.0.s8 %v943
        %v945 = vlaneseq
        %v946 = vshrl.u32 %v945, 7
        %v947 = vsub.s32 %v944, %v946
        %v948 = vrot.slane %v706, %v947
        %v950 = vunpack.c.l.s4 1966171168
        %v951 = vunpack.c.0.s8 %v950
        %v952 = vlaneseq
        %v953 = vshrl.u32 %v952, 7
        %v954 = vsub.s32 %v951, %v953
        %v955 = vrot.slane %v941, %v954
        %v956 = vcombine.high %v948, %v948
        %v957 = vcombine.high %v955, %v955
        %v959 = vunpack.c.l.s4 1966171168
        %v960 = vunpack.c.0.s8 %v959
        %v961 = vlaneseq
        %v962 = vshrl.u32 %v961, 7
        %v963 = vsub.s32 %v960, %v962
        %v964 = vrot.slane %v948, %v963
        %v966 = vunpack.c.l.s4 1966171168
        %v967 = vunpack.c.0.s8 %v966
        %v968 = vlaneseq
        %v969 = vshrl.u32 %v968, 7
        %v970 = vsub.s32 %v967, %v969
        %v971 = vrot.slane %v955, %v970
        %v973 = vunpack.c.l.s4 1966171168
        %v974 = vunpack.c.0.s8 %v973
        %v975 = vlaneseq
        %v976 = vshrl.u32 %v975, 7
        %v977 = vsub.s32 %v974, %v976
        %v978 = vrot.slane %v956, %v977
        %v980 = vunpack.c.l.s4 1966171168
        %v981 = vunpack.c.0.s8 %v980
        %v982 = vlaneseq
        %v983 = vshrl.u32 %v982, 7
        %v984 = vsub.s32 %v981, %v983
        %v985 = vrot.slane %v957, %v984
        %v986 = vcombine.high %v964, %v964
        %v987 = vcombine.high %v971, %v971
        %v988 = vcombine.high %v978, %v978
        %v989 = vcombine.high %v985, %v985
        %v990 = vlaneseq
        %v991 = vshrl.u32 %v990, 7
        %v992 = vsub.s32 0, %v991
        %v993 = vrot.slane %v964, %v992
        %v994 = vlaneseq
        %v995 = vshrl.u32 %v994, 7
        %v996 = vsub.s32 0, %v995
        %v997 = vrot.slane %v978, %v996
        %v998 = vlaneseq
        %v999 = vshrl.u32 %v998, 7
        %v1000 = vsub.s32 0, %v999
        %v1001 = vrot.slane %v986, %v1000
        %v1002 = vlaneseq
        %v1003 = vshrl.u32 %v1002, 7
        %v1004 = vsub.s32 0, %v1003
        %v1005 = vrot.slane %v988, %v1004
        %v1006 = vlaneseq
        %v1007 = vshrl.u32 %v1006, 7
        %v1008 = vsub.s32 0, %v1007
        %v1009 = vrot.slane %v971, %v1008
        %v1010 = vlaneseq
        %v1011 = vshrl.u32 %v1010, 7
        %v1012 = vsub.s32 0, %v1011
        %v1013 = vrot.slane %v985, %v1012
        %v1014 = vlaneseq
        %v1015 = vshrl.u32 %v1014, 7
        %v1016 = vsub.s32 0, %v1015
        %v1017 = vrot.slane %v987, %v1016
        %v1018 = vlaneseq
        %v1019 = vshrl.u32 %v1018, 7
        %v1020 = vsub.s32 0, %v1019
        %v1021 = vrot.slane %v989, %v1020
        %1022 = vset.pattern.permute.xlu0 0
        %1023 = vperm.xlu0 %1022, %v993
        %v1024 = vpop.permute.xlu0 %1023
        %1026 = vset.pattern.permute.xlu0 0
        %1027 = vperm.xlu0 %1026, %v997
        %v1028 = vpop.permute.xlu0 %1027
        %1030 = vset.pattern.permute.xlu0 0
        %1031 = vperm.xlu0 %1030, %v1001
        %v1032 = vpop.permute.xlu0 %1031
        %1034 = vset.pattern.permute.xlu0 0
        %1035 = vperm.xlu0 %1034, %v1005
        %v1036 = vpop.permute.xlu0 %1035
        %1038 = vset.pattern.permute.xlu0 0
        %1039 = vperm.xlu0 %1038, %v1009
        %v1040 = vpop.permute.xlu0 %1039
        %1042 = vset.pattern.permute.xlu0 0
        %1043 = vperm.xlu0 %1042, %v1013
        %v1044 = vpop.permute.xlu0 %1043
        %1046 = vset.pattern.permute.xlu0 0
        %1047 = vperm.xlu0 %1046, %v1017
        %v1048 = vpop.permute.xlu0 %1047
        %1050 = vset.pattern.permute.xlu0 0
        %1051 = vperm.xlu0 %1050, %v1021
        %v1052 = vpop.permute.xlu0 %1051
        %v1054 = vmul.f32 %v932, %v1024
        %v1055 = vmul.f32 %v933, %v1028
        %v1056 = vmul.f32 %v934, %v1032
        %v1057 = vmul.f32 %v935, %v1036
        %v1058 = vmul.f32 %v936, %v1040
        %v1059 = vmul.f32 %v937, %v1044
        %v1060 = vmul.f32 %v938, %v1048
        %v1061 = vmul.f32 %v939, %v1052
        %v1062 = vadd.f32 %v1054, %v1055
        %v1063 = vadd.f32 %v1062, %v1056
        %v1064 = vadd.f32 %v1063, %v1057
        %v1065 = vadd.f32 %v1064, %v1058
        %v1066 = vadd.f32 %v1065, %v1059
        %v1067 = vadd.f32 %v1066, %v1060
        %v1068 = vadd.f32 %v1067, %v1061
        %v1069 = vadd.f32 %v1068, 0.0
        %v1070 = vlaneseq
        %v1071 = vshrl.u32 %v1070, 7
        %v1072 = vsub.s32 0, %v1071
        %v1073 = vrot.slane %v731, %v1072
        %1075 = vbcast.lane.b32.xlu0 %v1073, 256
        %v1076 = vpop.permute.xlu0 %1075
        %v1077 = vlaneseq
        %v1078 = vshrl.u32 %v1077, 7
        %v1079 = vsub.s32 1, %v1078
        %v1080 = vrot.slane %v731, %v1079
        %1082 = vbcast.lane.b32.xlu0 %v1080, 256
        %v1083 = vpop.permute.xlu0 %1082
        %v1084 = vlaneseq
        %v1085 = vshrl.u32 %v1084, 7
        %v1086 = vsub.s32 2, %v1085
        %v1087 = vrot.slane %v731, %v1086
        %1089 = vbcast.lane.b32.xlu0 %v1087, 256
        %v1090 = vpop.permute.xlu0 %1089
        %v1091 = vlaneseq
        %v1092 = vshrl.u32 %v1091, 7
        %v1093 = vsub.s32 3, %v1092
        %v1094 = vrot.slane %v731, %v1093
        %1096 = vbcast.lane.b32.xlu0 %v1094, 256
        %v1097 = vpop.permute.xlu0 %1096
        %v1098 = vlaneseq
        %v1099 = vshrl.u32 %v1098, 7
        %v1100 = vsub.s32 4, %v1099
        %v1101 = vrot.slane %v731, %v1100
        %1103 = vbcast.lane.b32.xlu0 %v1101, 256
        %v1104 = vpop.permute.xlu0 %1103
        %v1105 = vlaneseq
        %v1106 = vshrl.u32 %v1105, 7
        %v1107 = vsub.s32 5, %v1106
        %v1108 = vrot.slane %v731, %v1107
        %1110 = vbcast.lane.b32.xlu0 %v1108, 256
        %v1111 = vpop.permute.xlu0 %1110
        %v1112 = vlaneseq
        %v1113 = vshrl.u32 %v1112, 7
        %v1114 = vsub.s32 6, %v1113
        %v1115 = vrot.slane %v731, %v1114
        %1117 = vbcast.lane.b32.xlu0 %v1115, 256
        %v1118 = vpop.permute.xlu0 %1117
        %v1119 = vlaneseq
        %v1120 = vshrl.u32 %v1119, 7
        %v1121 = vsub.s32 7, %v1120
        %v1122 = vrot.slane %v731, %v1121
        %1124 = vbcast.lane.b32.xlu0 %v1122, 256
        %v1125 = vpop.permute.xlu0 %1124
        %v1127 = vcombine.high %v763, %v763
        %v1129 = vunpack.c.l.s4 1966171168
        %v1130 = vunpack.c.0.s8 %v1129
        %v1131 = vlaneseq
        %v1132 = vshrl.u32 %v1131, 7
        %v1133 = vsub.s32 %v1130, %v1132
        %v1134 = vrot.slane %v763, %v1133
        %v1136 = vunpack.c.l.s4 1966171168
        %v1137 = vunpack.c.0.s8 %v1136
        %v1138 = vlaneseq
        %v1139 = vshrl.u32 %v1138, 7
        %v1140 = vsub.s32 %v1137, %v1139
        %v1141 = vrot.slane %v1127, %v1140
        %v1142 = vcombine.high %v1134, %v1134
        %v1143 = vcombine.high %v1141, %v1141
        %v1145 = vunpack.c.l.s4 1966171168
        %v1146 = vunpack.c.0.s8 %v1145
        %v1147 = vlaneseq
        %v1148 = vshrl.u32 %v1147, 7
        %v1149 = vsub.s32 %v1146, %v1148
        %v1150 = vrot.slane %v1134, %v1149
        %v1152 = vunpack.c.l.s4 1966171168
        %v1153 = vunpack.c.0.s8 %v1152
        %v1154 = vlaneseq
        %v1155 = vshrl.u32 %v1154, 7
        %v1156 = vsub.s32 %v1153, %v1155
        %v1157 = vrot.slane %v1141, %v1156
        %v1159 = vunpack.c.l.s4 1966171168
        %v1160 = vunpack.c.0.s8 %v1159
        %v1161 = vlaneseq
        %v1162 = vshrl.u32 %v1161, 7
        %v1163 = vsub.s32 %v1160, %v1162
        %v1164 = vrot.slane %v1142, %v1163
        %v1166 = vunpack.c.l.s4 1966171168
        %v1167 = vunpack.c.0.s8 %v1166
        %v1168 = vlaneseq
        %v1169 = vshrl.u32 %v1168, 7
        %v1170 = vsub.s32 %v1167, %v1169
        %v1171 = vrot.slane %v1143, %v1170
        %v1172 = vcombine.high %v1150, %v1150
        %v1173 = vcombine.high %v1157, %v1157
        %v1174 = vcombine.high %v1164, %v1164
        %v1175 = vcombine.high %v1171, %v1171
        %v1176 = vlaneseq
        %v1177 = vshrl.u32 %v1176, 7
        %v1178 = vsub.s32 0, %v1177
        %v1179 = vrot.slane %v1150, %v1178
        %v1180 = vlaneseq
        %v1181 = vshrl.u32 %v1180, 7
        %v1182 = vsub.s32 0, %v1181
        %v1183 = vrot.slane %v1164, %v1182
        %v1184 = vlaneseq
        %v1185 = vshrl.u32 %v1184, 7
        %v1186 = vsub.s32 0, %v1185
        %v1187 = vrot.slane %v1172, %v1186
        %v1188 = vlaneseq
        %v1189 = vshrl.u32 %v1188, 7
        %v1190 = vsub.s32 0, %v1189
        %v1191 = vrot.slane %v1174, %v1190
        %v1192 = vlaneseq
        %v1193 = vshrl.u32 %v1192, 7
        %v1194 = vsub.s32 0, %v1193
        %v1195 = vrot.slane %v1157, %v1194
        %v1196 = vlaneseq
        %v1197 = vshrl.u32 %v1196, 7
        %v1198 = vsub.s32 0, %v1197
        %v1199 = vrot.slane %v1171, %v1198
        %v1200 = vlaneseq
        %v1201 = vshrl.u32 %v1200, 7
        %v1202 = vsub.s32 0, %v1201
        %v1203 = vrot.slane %v1173, %v1202
        %v1204 = vlaneseq
        %v1205 = vshrl.u32 %v1204, 7
        %v1206 = vsub.s32 0, %v1205
        %v1207 = vrot.slane %v1175, %v1206
        %v1216 = vadd.f32 %v1076, %v1179
        %v1217 = vadd.f32 %v1083, %v1183
        %v1218 = vadd.f32 %v1090, %v1187
        %v1219 = vadd.f32 %v1097, %v1191
        %v1220 = vadd.f32 %v1104, %v1195
        %v1221 = vadd.f32 %v1111, %v1199
        %v1222 = vadd.f32 %v1118, %v1203
        %v1223 = vadd.f32 %v1125, %v1207
        %v1224 = vtanh.pop %v1216
        %v1225 = vtanh.pop %v1217
        %v1226 = vtanh.pop %v1218
        %v1227 = vtanh.pop %v1219
        %v1228 = vtanh.pop %v1220
        %v1229 = vtanh.pop %v1221
        %v1230 = vtanh.pop %v1222
        %v1231 = vtanh.pop %v1223
        %v1233 = vcombine.high %v707, %v707
        %v1235 = vunpack.c.l.s4 1966171168
        %v1236 = vunpack.c.0.s8 %v1235
        %v1237 = vlaneseq
        %v1238 = vshrl.u32 %v1237, 7
        %v1239 = vsub.s32 %v1236, %v1238
        %v1240 = vrot.slane %v707, %v1239
        %v1242 = vunpack.c.l.s4 1966171168
        %v1243 = vunpack.c.0.s8 %v1242
        %v1244 = vlaneseq
        %v1245 = vshrl.u32 %v1244, 7
        %v1246 = vsub.s32 %v1243, %v1245
        %v1247 = vrot.slane %v1233, %v1246
        %v1248 = vcombine.high %v1240, %v1240
        %v1249 = vcombine.high %v1247, %v1247
        %v1251 = vunpack.c.l.s4 1966171168
        %v1252 = vunpack.c.0.s8 %v1251
        %v1253 = vlaneseq
        %v1254 = vshrl.u32 %v1253, 7
        %v1255 = vsub.s32 %v1252, %v1254
        %v1256 = vrot.slane %v1240, %v1255
        %v1258 = vunpack.c.l.s4 1966171168
        %v1259 = vunpack.c.0.s8 %v1258
        %v1260 = vlaneseq
        %v1261 = vshrl.u32 %v1260, 7
        %v1262 = vsub.s32 %v1259, %v1261
        %v1263 = vrot.slane %v1247, %v1262
        %v1265 = vunpack.c.l.s4 1966171168
        %v1266 = vunpack.c.0.s8 %v1265
        %v1267 = vlaneseq
        %v1268 = vshrl.u32 %v1267, 7
        %v1269 = vsub.s32 %v1266, %v1268
        %v1270 = vrot.slane %v1248, %v1269
        %v1272 = vunpack.c.l.s4 1966171168
        %v1273 = vunpack.c.0.s8 %v1272
        %v1274 = vlaneseq
        %v1275 = vshrl.u32 %v1274, 7
        %v1276 = vsub.s32 %v1273, %v1275
        %v1277 = vrot.slane %v1249, %v1276
        %v1278 = vcombine.high %v1256, %v1256
        %v1279 = vcombine.high %v1263, %v1263
        %v1280 = vcombine.high %v1270, %v1270
        %v1281 = vcombine.high %v1277, %v1277
        %v1282 = vlaneseq
        %v1283 = vshrl.u32 %v1282, 7
        %v1284 = vsub.s32 0, %v1283
        %v1285 = vrot.slane %v1256, %v1284
        %v1286 = vlaneseq
        %v1287 = vshrl.u32 %v1286, 7
        %v1288 = vsub.s32 0, %v1287
        %v1289 = vrot.slane %v1270, %v1288
        %v1290 = vlaneseq
        %v1291 = vshrl.u32 %v1290, 7
        %v1292 = vsub.s32 0, %v1291
        %v1293 = vrot.slane %v1278, %v1292
        %v1294 = vlaneseq
        %v1295 = vshrl.u32 %v1294, 7
        %v1296 = vsub.s32 0, %v1295
        %v1297 = vrot.slane %v1280, %v1296
        %v1298 = vlaneseq
        %v1299 = vshrl.u32 %v1298, 7
        %v1300 = vsub.s32 0, %v1299
        %v1301 = vrot.slane %v1263, %v1300
        %v1302 = vlaneseq
        %v1303 = vshrl.u32 %v1302, 7
        %v1304 = vsub.s32 0, %v1303
        %v1305 = vrot.slane %v1277, %v1304
        %v1306 = vlaneseq
        %v1307 = vshrl.u32 %v1306, 7
        %v1308 = vsub.s32 0, %v1307
        %v1309 = vrot.slane %v1279, %v1308
        %v1310 = vlaneseq
        %v1311 = vshrl.u32 %v1310, 7
        %v1312 = vsub.s32 0, %v1311
        %v1313 = vrot.slane %v1281, %v1312
        %1314 = vset.pattern.permute.xlu0 0
        %1315 = vperm.xlu0 %1314, %v1285
        %v1316 = vpop.permute.xlu0 %1315
        %1318 = vset.pattern.permute.xlu0 0
        %1319 = vperm.xlu0 %1318, %v1289
        %v1320 = vpop.permute.xlu0 %1319
        %1322 = vset.pattern.permute.xlu0 0
        %1323 = vperm.xlu0 %1322, %v1293
        %v1324 = vpop.permute.xlu0 %1323
        %1326 = vset.pattern.permute.xlu0 0
        %1327 = vperm.xlu0 %1326, %v1297
        %v1328 = vpop.permute.xlu0 %1327
        %1330 = vset.pattern.permute.xlu0 0
        %1331 = vperm.xlu0 %1330, %v1301
        %v1332 = vpop.permute.xlu0 %1331
        %1334 = vset.pattern.permute.xlu0 0
        %1335 = vperm.xlu0 %1334, %v1305
        %v1336 = vpop.permute.xlu0 %1335
        %1338 = vset.pattern.permute.xlu0 0
        %1339 = vperm.xlu0 %1338, %v1309
        %v1340 = vpop.permute.xlu0 %1339
        %1342 = vset.pattern.permute.xlu0 0
        %1343 = vperm.xlu0 %1342, %v1313
        %v1344 = vpop.permute.xlu0 %1343
        %v1346 = vmul.f32 %v1224, %v1316
        %v1347 = vmul.f32 %v1225, %v1320
        %v1348 = vmul.f32 %v1226, %v1324
        %v1349 = vmul.f32 %v1227, %v1328
        %v1350 = vmul.f32 %v1228, %v1332
        %v1351 = vmul.f32 %v1229, %v1336
        %v1352 = vmul.f32 %v1230, %v1340
        %v1353 = vmul.f32 %v1231, %v1344
        %v1354 = vadd.f32 %v1346, %v1347
        %v1355 = vadd.f32 %v1354, %v1348
        %v1356 = vadd.f32 %v1355, %v1349
        %v1357 = vadd.f32 %v1356, %v1350
        %v1358 = vadd.f32 %v1357, %v1351
        %v1359 = vadd.f32 %v1358, %v1352
        %v1360 = vadd.f32 %v1359, %v1353
        %v1361 = vadd.f32 %v1069, %v1360
        %v1362 = vlaneseq
        %v1363 = vshrl.u32 %v1362, 7
        %v1364 = vsub.s32 0, %v1363
        %v1365 = vrot.slane %v732, %v1364
        %1367 = vbcast.lane.b32.xlu0 %v1365, 256
        %v1368 = vpop.permute.xlu0 %1367
        %v1369 = vlaneseq
        %v1370 = vshrl.u32 %v1369, 7
        %v1371 = vsub.s32 1, %v1370
        %v1372 = vrot.slane %v732, %v1371
        %1374 = vbcast.lane.b32.xlu0 %v1372, 256
        %v1375 = vpop.permute.xlu0 %1374
        %v1376 = vlaneseq
        %v1377 = vshrl.u32 %v1376, 7
        %v1378 = vsub.s32 2, %v1377
        %v1379 = vrot.slane %v732, %v1378
        %1381 = vbcast.lane.b32.xlu0 %v1379, 256
        %v1382 = vpop.permute.xlu0 %1381
        %v1383 = vlaneseq
        %v1384 = vshrl.u32 %v1383, 7
        %v1385 = vsub.s32 3, %v1384
        %v1386 = vrot.slane %v732, %v1385
        %1388 = vbcast.lane.b32.xlu0 %v1386, 256
        %v1389 = vpop.permute.xlu0 %1388
        %v1390 = vlaneseq
        %v1391 = vshrl.u32 %v1390, 7
        %v1392 = vsub.s32 4, %v1391
        %v1393 = vrot.slane %v732, %v1392
        %1395 = vbcast.lane.b32.xlu0 %v1393, 256
        %v1396 = vpop.permute.xlu0 %1395
        %v1397 = vlaneseq
        %v1398 = vshrl.u32 %v1397, 7
        %v1399 = vsub.s32 5, %v1398
        %v1400 = vrot.slane %v732, %v1399
        %1402 = vbcast.lane.b32.xlu0 %v1400, 256
        %v1403 = vpop.permute.xlu0 %1402
        %v1404 = vlaneseq
        %v1405 = vshrl.u32 %v1404, 7
        %v1406 = vsub.s32 6, %v1405
        %v1407 = vrot.slane %v732, %v1406
        %1409 = vbcast.lane.b32.xlu0 %v1407, 256
        %v1410 = vpop.permute.xlu0 %1409
        %v1411 = vlaneseq
        %v1412 = vshrl.u32 %v1411, 7
        %v1413 = vsub.s32 7, %v1412
        %v1414 = vrot.slane %v732, %v1413
        %1416 = vbcast.lane.b32.xlu0 %v1414, 256
        %v1417 = vpop.permute.xlu0 %1416
        %v1419 = vcombine.high %v764, %v764
        %v1421 = vunpack.c.l.s4 1966171168
        %v1422 = vunpack.c.0.s8 %v1421
        %v1423 = vlaneseq
        %v1424 = vshrl.u32 %v1423, 7
        %v1425 = vsub.s32 %v1422, %v1424
        %v1426 = vrot.slane %v764, %v1425
        %v1428 = vunpack.c.l.s4 1966171168
        %v1429 = vunpack.c.0.s8 %v1428
        %v1430 = vlaneseq
        %v1431 = vshrl.u32 %v1430, 7
        %v1432 = vsub.s32 %v1429, %v1431
        %v1433 = vrot.slane %v1419, %v1432
        %v1434 = vcombine.high %v1426, %v1426
        %v1435 = vcombine.high %v1433, %v1433
        %v1437 = vunpack.c.l.s4 1966171168
        %v1438 = vunpack.c.0.s8 %v1437
        %v1439 = vlaneseq
        %v1440 = vshrl.u32 %v1439, 7
        %v1441 = vsub.s32 %v1438, %v1440
        %v1442 = vrot.slane %v1426, %v1441
        %v1444 = vunpack.c.l.s4 1966171168
        %v1445 = vunpack.c.0.s8 %v1444
        %v1446 = vlaneseq
        %v1447 = vshrl.u32 %v1446, 7
        %v1448 = vsub.s32 %v1445, %v1447
        %v1449 = vrot.slane %v1433, %v1448
        %v1451 = vunpack.c.l.s4 1966171168
        %v1452 = vunpack.c.0.s8 %v1451
        %v1453 = vlaneseq
        %v1454 = vshrl.u32 %v1453, 7
        %v1455 = vsub.s32 %v1452, %v1454
        %v1456 = vrot.slane %v1434, %v1455
        %v1458 = vunpack.c.l.s4 1966171168
        %v1459 = vunpack.c.0.s8 %v1458
        %v1460 = vlaneseq
        %v1461 = vshrl.u32 %v1460, 7
        %v1462 = vsub.s32 %v1459, %v1461
        %v1463 = vrot.slane %v1435, %v1462
        %v1464 = vcombine.high %v1442, %v1442
        %v1465 = vcombine.high %v1449, %v1449
        %v1466 = vcombine.high %v1456, %v1456
        %v1467 = vcombine.high %v1463, %v1463
        %v1468 = vlaneseq
        %v1469 = vshrl.u32 %v1468, 7
        %v1470 = vsub.s32 0, %v1469
        %v1471 = vrot.slane %v1442, %v1470
        %v1472 = vlaneseq
        %v1473 = vshrl.u32 %v1472, 7
        %v1474 = vsub.s32 0, %v1473
        %v1475 = vrot.slane %v1456, %v1474
        %v1476 = vlaneseq
        %v1477 = vshrl.u32 %v1476, 7
        %v1478 = vsub.s32 0, %v1477
        %v1479 = vrot.slane %v1464, %v1478
        %v1480 = vlaneseq
        %v1481 = vshrl.u32 %v1480, 7
        %v1482 = vsub.s32 0, %v1481
        %v1483 = vrot.slane %v1466, %v1482
        %v1484 = vlaneseq
        %v1485 = vshrl.u32 %v1484, 7
        %v1486 = vsub.s32 0, %v1485
        %v1487 = vrot.slane %v1449, %v1486
        %v1488 = vlaneseq
        %v1489 = vshrl.u32 %v1488, 7
        %v1490 = vsub.s32 0, %v1489
        %v1491 = vrot.slane %v1463, %v1490
        %v1492 = vlaneseq
        %v1493 = vshrl.u32 %v1492, 7
        %v1494 = vsub.s32 0, %v1493
        %v1495 = vrot.slane %v1465, %v1494
        %v1496 = vlaneseq
        %v1497 = vshrl.u32 %v1496, 7
        %v1498 = vsub.s32 0, %v1497
        %v1499 = vrot.slane %v1467, %v1498
        %v1508 = vadd.f32 %v1368, %v1471
        %v1509 = vadd.f32 %v1375, %v1475
        %v1510 = vadd.f32 %v1382, %v1479
        %v1511 = vadd.f32 %v1389, %v1483
        %v1512 = vadd.f32 %v1396, %v1487
        %v1513 = vadd.f32 %v1403, %v1491
        %v1514 = vadd.f32 %v1410, %v1495
        %v1515 = vadd.f32 %v1417, %v1499
        %v1516 = vtanh.pop %v1508
        %v1517 = vtanh.pop %v1509
        %v1518 = vtanh.pop %v1510
        %v1519 = vtanh.pop %v1511
        %v1520 = vtanh.pop %v1512
        %v1521 = vtanh.pop %v1513
        %v1522 = vtanh.pop %v1514
        %v1523 = vtanh.pop %v1515
        %v1525 = vcombine.high %v708, %v708
        %v1527 = vunpack.c.l.s4 1966171168
        %v1528 = vunpack.c.0.s8 %v1527
        %v1529 = vlaneseq
        %v1530 = vshrl.u32 %v1529, 7
        %v1531 = vsub.s32 %v1528, %v1530
        %v1532 = vrot.slane %v708, %v1531
        %v1534 = vunpack.c.l.s4 1966171168
        %v1535 = vunpack.c.0.s8 %v1534
        %v1536 = vlaneseq
        %v1537 = vshrl.u32 %v1536, 7
        %v1538 = vsub.s32 %v1535, %v1537
        %v1539 = vrot.slane %v1525, %v1538
        %v1540 = vcombine.high %v1532, %v1532
        %v1541 = vcombine.high %v1539, %v1539
        %v1543 = vunpack.c.l.s4 1966171168
        %v1544 = vunpack.c.0.s8 %v1543
        %v1545 = vlaneseq
        %v1546 = vshrl.u32 %v1545, 7
        %v1547 = vsub.s32 %v1544, %v1546
        %v1548 = vrot.slane %v1532, %v1547
        %v1550 = vunpack.c.l.s4 1966171168
        %v1551 = vunpack.c.0.s8 %v1550
        %v1552 = vlaneseq
        %v1553 = vshrl.u32 %v1552, 7
        %v1554 = vsub.s32 %v1551, %v1553
        %v1555 = vrot.slane %v1539, %v1554
        %v1557 = vunpack.c.l.s4 1966171168
        %v1558 = vunpack.c.0.s8 %v1557
        %v1559 = vlaneseq
        %v1560 = vshrl.u32 %v1559, 7
        %v1561 = vsub.s32 %v1558, %v1560
        %v1562 = vrot.slane %v1540, %v1561
        %v1564 = vunpack.c.l.s4 1966171168
        %v1565 = vunpack.c.0.s8 %v1564
        %v1566 = vlaneseq
        %v1567 = vshrl.u32 %v1566, 7
        %v1568 = vsub.s32 %v1565, %v1567
        %v1569 = vrot.slane %v1541, %v1568
        %v1570 = vcombine.high %v1548, %v1548
        %v1571 = vcombine.high %v1555, %v1555
        %v1572 = vcombine.high %v1562, %v1562
        %v1573 = vcombine.high %v1569, %v1569
        %v1574 = vlaneseq
        %v1575 = vshrl.u32 %v1574, 7
        %v1576 = vsub.s32 0, %v1575
        %v1577 = vrot.slane %v1548, %v1576
        %v1578 = vlaneseq
        %v1579 = vshrl.u32 %v1578, 7
        %v1580 = vsub.s32 0, %v1579
        %v1581 = vrot.slane %v1562, %v1580
        %v1582 = vlaneseq
        %v1583 = vshrl.u32 %v1582, 7
        %v1584 = vsub.s32 0, %v1583
        %v1585 = vrot.slane %v1570, %v1584
        %v1586 = vlaneseq
        %v1587 = vshrl.u32 %v1586, 7
        %v1588 = vsub.s32 0, %v1587
        %v1589 = vrot.slane %v1572, %v1588
        %v1590 = vlaneseq
        %v1591 = vshrl.u32 %v1590, 7
        %v1592 = vsub.s32 0, %v1591
        %v1593 = vrot.slane %v1555, %v1592
        %v1594 = vlaneseq
        %v1595 = vshrl.u32 %v1594, 7
        %v1596 = vsub.s32 0, %v1595
        %v1597 = vrot.slane %v1569, %v1596
        %v1598 = vlaneseq
        %v1599 = vshrl.u32 %v1598, 7
        %v1600 = vsub.s32 0, %v1599
        %v1601 = vrot.slane %v1571, %v1600
        %v1602 = vlaneseq
        %v1603 = vshrl.u32 %v1602, 7
        %v1604 = vsub.s32 0, %v1603
        %v1605 = vrot.slane %v1573, %v1604
        %1606 = vset.pattern.permute.xlu0 0
        %1607 = vperm.xlu0 %1606, %v1577
        %v1608 = vpop.permute.xlu0 %1607
        %1610 = vset.pattern.permute.xlu0 0
        %1611 = vperm.xlu0 %1610, %v1581
        %v1612 = vpop.permute.xlu0 %1611
        %1614 = vset.pattern.permute.xlu0 0
        %1615 = vperm.xlu0 %1614, %v1585
        %v1616 = vpop.permute.xlu0 %1615
        %1618 = vset.pattern.permute.xlu0 0
        %1619 = vperm.xlu0 %1618, %v1589
        %v1620 = vpop.permute.xlu0 %1619
        %1622 = vset.pattern.permute.xlu0 0
        %1623 = vperm.xlu0 %1622, %v1593
        %v1624 = vpop.permute.xlu0 %1623
        %1626 = vset.pattern.permute.xlu0 0
        %1627 = vperm.xlu0 %1626, %v1597
        %v1628 = vpop.permute.xlu0 %1627
        %1630 = vset.pattern.permute.xlu0 0
        %1631 = vperm.xlu0 %1630, %v1601
        %v1632 = vpop.permute.xlu0 %1631
        %1634 = vset.pattern.permute.xlu0 0
        %1635 = vperm.xlu0 %1634, %v1605
        %v1636 = vpop.permute.xlu0 %1635
        %v1638 = vmul.f32 %v1516, %v1608
        %v1639 = vmul.f32 %v1517, %v1612
        %v1640 = vmul.f32 %v1518, %v1616
        %v1641 = vmul.f32 %v1519, %v1620
        %v1642 = vmul.f32 %v1520, %v1624
        %v1643 = vmul.f32 %v1521, %v1628
        %v1644 = vmul.f32 %v1522, %v1632
        %v1645 = vmul.f32 %v1523, %v1636
        %v1646 = vadd.f32 %v1638, %v1639
        %v1647 = vadd.f32 %v1646, %v1640
        %v1648 = vadd.f32 %v1647, %v1641
        %v1649 = vadd.f32 %v1648, %v1642
        %v1650 = vadd.f32 %v1649, %v1643
        %v1651 = vadd.f32 %v1650, %v1644
        %v1652 = vadd.f32 %v1651, %v1645
        %v1653 = vadd.f32 %v1361, %v1652
        %v1654 = vlaneseq
        %v1655 = vshrl.u32 %v1654, 7
        %v1656 = vsub.s32 0, %v1655
        %v1657 = vrot.slane %v733, %v1656
        %1659 = vbcast.lane.b32.xlu0 %v1657, 256
        %v1660 = vpop.permute.xlu0 %1659
        %v1661 = vlaneseq
        %v1662 = vshrl.u32 %v1661, 7
        %v1663 = vsub.s32 1, %v1662
        %v1664 = vrot.slane %v733, %v1663
        %1666 = vbcast.lane.b32.xlu0 %v1664, 256
        %v1667 = vpop.permute.xlu0 %1666
        %v1668 = vlaneseq
        %v1669 = vshrl.u32 %v1668, 7
        %v1670 = vsub.s32 2, %v1669
        %v1671 = vrot.slane %v733, %v1670
        %1673 = vbcast.lane.b32.xlu0 %v1671, 256
        %v1674 = vpop.permute.xlu0 %1673
        %v1675 = vlaneseq
        %v1676 = vshrl.u32 %v1675, 7
        %v1677 = vsub.s32 3, %v1676
        %v1678 = vrot.slane %v733, %v1677
        %1680 = vbcast.lane.b32.xlu0 %v1678, 256
        %v1681 = vpop.permute.xlu0 %1680
        %v1682 = vlaneseq
        %v1683 = vshrl.u32 %v1682, 7
        %v1684 = vsub.s32 4, %v1683
        %v1685 = vrot.slane %v733, %v1684
        %1687 = vbcast.lane.b32.xlu0 %v1685, 256
        %v1688 = vpop.permute.xlu0 %1687
        %v1689 = vlaneseq
        %v1690 = vshrl.u32 %v1689, 7
        %v1691 = vsub.s32 5, %v1690
        %v1692 = vrot.slane %v733, %v1691
        %1694 = vbcast.lane.b32.xlu0 %v1692, 256
        %v1695 = vpop.permute.xlu0 %1694
        %v1696 = vlaneseq
        %v1697 = vshrl.u32 %v1696, 7
        %v1698 = vsub.s32 6, %v1697
        %v1699 = vrot.slane %v733, %v1698
        %1701 = vbcast.lane.b32.xlu0 %v1699, 256
        %v1702 = vpop.permute.xlu0 %1701
        %v1703 = vlaneseq
        %v1704 = vshrl.u32 %v1703, 7
        %v1705 = vsub.s32 7, %v1704
        %v1706 = vrot.slane %v733, %v1705
        %1708 = vbcast.lane.b32.xlu0 %v1706, 256
        %v1709 = vpop.permute.xlu0 %1708
        %v1711 = vcombine.high %v765, %v765
        %v1713 = vunpack.c.l.s4 1966171168
        %v1714 = vunpack.c.0.s8 %v1713
        %v1715 = vlaneseq
        %v1716 = vshrl.u32 %v1715, 7
        %v1717 = vsub.s32 %v1714, %v1716
        %v1718 = vrot.slane %v765, %v1717
        %v1720 = vunpack.c.l.s4 1966171168
        %v1721 = vunpack.c.0.s8 %v1720
        %v1722 = vlaneseq
        %v1723 = vshrl.u32 %v1722, 7
        %v1724 = vsub.s32 %v1721, %v1723
        %v1725 = vrot.slane %v1711, %v1724
        %v1726 = vcombine.high %v1718, %v1718
        %v1727 = vcombine.high %v1725, %v1725
        %v1729 = vunpack.c.l.s4 1966171168
        %v1730 = vunpack.c.0.s8 %v1729
        %v1731 = vlaneseq
        %v1732 = vshrl.u32 %v1731, 7
        %v1733 = vsub.s32 %v1730, %v1732
        %v1734 = vrot.slane %v1718, %v1733
        %v1736 = vunpack.c.l.s4 1966171168
        %v1737 = vunpack.c.0.s8 %v1736
        %v1738 = vlaneseq
        %v1739 = vshrl.u32 %v1738, 7
        %v1740 = vsub.s32 %v1737, %v1739
        %v1741 = vrot.slane %v1725, %v1740
        %v1743 = vunpack.c.l.s4 1966171168
        %v1744 = vunpack.c.0.s8 %v1743
        %v1745 = vlaneseq
        %v1746 = vshrl.u32 %v1745, 7
        %v1747 = vsub.s32 %v1744, %v1746
        %v1748 = vrot.slane %v1726, %v1747
        %v1750 = vunpack.c.l.s4 1966171168
        %v1751 = vunpack.c.0.s8 %v1750
        %v1752 = vlaneseq
        %v1753 = vshrl.u32 %v1752, 7
        %v1754 = vsub.s32 %v1751, %v1753
        %v1755 = vrot.slane %v1727, %v1754
        %v1756 = vcombine.high %v1734, %v1734
        %v1757 = vcombine.high %v1741, %v1741
        %v1758 = vcombine.high %v1748, %v1748
        %v1759 = vcombine.high %v1755, %v1755
        %v1760 = vlaneseq
        %v1761 = vshrl.u32 %v1760, 7
        %v1762 = vsub.s32 0, %v1761
        %v1763 = vrot.slane %v1734, %v1762
        %v1764 = vlaneseq
        %v1765 = vshrl.u32 %v1764, 7
        %v1766 = vsub.s32 0, %v1765
        %v1767 = vrot.slane %v1748, %v1766
        %v1768 = vlaneseq
        %v1769 = vshrl.u32 %v1768, 7
        %v1770 = vsub.s32 0, %v1769
        %v1771 = vrot.slane %v1756, %v1770
        %v1772 = vlaneseq
        %v1773 = vshrl.u32 %v1772, 7
        %v1774 = vsub.s32 0, %v1773
        %v1775 = vrot.slane %v1758, %v1774
        %v1776 = vlaneseq
        %v1777 = vshrl.u32 %v1776, 7
        %v1778 = vsub.s32 0, %v1777
        %v1779 = vrot.slane %v1741, %v1778
        %v1780 = vlaneseq
        %v1781 = vshrl.u32 %v1780, 7
        %v1782 = vsub.s32 0, %v1781
        %v1783 = vrot.slane %v1755, %v1782
        %v1784 = vlaneseq
        %v1785 = vshrl.u32 %v1784, 7
        %v1786 = vsub.s32 0, %v1785
        %v1787 = vrot.slane %v1757, %v1786
        %v1788 = vlaneseq
        %v1789 = vshrl.u32 %v1788, 7
        %v1790 = vsub.s32 0, %v1789
        %v1791 = vrot.slane %v1759, %v1790
        %v1800 = vadd.f32 %v1660, %v1763
        %v1801 = vadd.f32 %v1667, %v1767
        %v1802 = vadd.f32 %v1674, %v1771
        %v1803 = vadd.f32 %v1681, %v1775
        %v1804 = vadd.f32 %v1688, %v1779
        %v1805 = vadd.f32 %v1695, %v1783
        %v1806 = vadd.f32 %v1702, %v1787
        %v1807 = vadd.f32 %v1709, %v1791
        %v1808 = vtanh.pop %v1800
        %v1809 = vtanh.pop %v1801
        %v1810 = vtanh.pop %v1802
        %v1811 = vtanh.pop %v1803
        %v1812 = vtanh.pop %v1804
        %v1813 = vtanh.pop %v1805
        %v1814 = vtanh.pop %v1806
        %v1815 = vtanh.pop %v1807
        %v1817 = vcombine.high %v709, %v709
        %v1819 = vunpack.c.l.s4 1966171168
        %v1820 = vunpack.c.0.s8 %v1819
        %v1821 = vlaneseq
        %v1822 = vshrl.u32 %v1821, 7
        %v1823 = vsub.s32 %v1820, %v1822
        %v1824 = vrot.slane %v709, %v1823
        %v1826 = vunpack.c.l.s4 1966171168
        %v1827 = vunpack.c.0.s8 %v1826
        %v1828 = vlaneseq
        %v1829 = vshrl.u32 %v1828, 7
        %v1830 = vsub.s32 %v1827, %v1829
        %v1831 = vrot.slane %v1817, %v1830
        %v1832 = vcombine.high %v1824, %v1824
        %v1833 = vcombine.high %v1831, %v1831
        %v1835 = vunpack.c.l.s4 1966171168
        %v1836 = vunpack.c.0.s8 %v1835
        %v1837 = vlaneseq
        %v1838 = vshrl.u32 %v1837, 7
        %v1839 = vsub.s32 %v1836, %v1838
        %v1840 = vrot.slane %v1824, %v1839
        %v1842 = vunpack.c.l.s4 1966171168
        %v1843 = vunpack.c.0.s8 %v1842
        %v1844 = vlaneseq
        %v1845 = vshrl.u32 %v1844, 7
        %v1846 = vsub.s32 %v1843, %v1845
        %v1847 = vrot.slane %v1831, %v1846
        %v1849 = vunpack.c.l.s4 1966171168
        %v1850 = vunpack.c.0.s8 %v1849
        %v1851 = vlaneseq
        %v1852 = vshrl.u32 %v1851, 7
        %v1853 = vsub.s32 %v1850, %v1852
        %v1854 = vrot.slane %v1832, %v1853
        %v1856 = vunpack.c.l.s4 1966171168
        %v1857 = vunpack.c.0.s8 %v1856
        %v1858 = vlaneseq
        %v1859 = vshrl.u32 %v1858, 7
        %v1860 = vsub.s32 %v1857, %v1859
        %v1861 = vrot.slane %v1833, %v1860
        %v1862 = vcombine.high %v1840, %v1840
        %v1863 = vcombine.high %v1847, %v1847
        %v1864 = vcombine.high %v1854, %v1854
        %v1865 = vcombine.high %v1861, %v1861
        %v1866 = vlaneseq
        %v1867 = vshrl.u32 %v1866, 7
        %v1868 = vsub.s32 0, %v1867
        %v1869 = vrot.slane %v1840, %v1868
        %v1870 = vlaneseq
        %v1871 = vshrl.u32 %v1870, 7
        %v1872 = vsub.s32 0, %v1871
        %v1873 = vrot.slane %v1854, %v1872
        %v1874 = vlaneseq
        %v1875 = vshrl.u32 %v1874, 7
        %v1876 = vsub.s32 0, %v1875
        %v1877 = vrot.slane %v1862, %v1876
        %v1878 = vlaneseq
        %v1879 = vshrl.u32 %v1878, 7
        %v1880 = vsub.s32 0, %v1879
        %v1881 = vrot.slane %v1864, %v1880
        %v1882 = vlaneseq
        %v1883 = vshrl.u32 %v1882, 7
        %v1884 = vsub.s32 0, %v1883
        %v1885 = vrot.slane %v1847, %v1884
        %v1886 = vlaneseq
        %v1887 = vshrl.u32 %v1886, 7
        %v1888 = vsub.s32 0, %v1887
        %v1889 = vrot.slane %v1861, %v1888
        %v1890 = vlaneseq
        %v1891 = vshrl.u32 %v1890, 7
        %v1892 = vsub.s32 0, %v1891
        %v1893 = vrot.slane %v1863, %v1892
        %v1894 = vlaneseq
        %v1895 = vshrl.u32 %v1894, 7
        %v1896 = vsub.s32 0, %v1895
        %v1897 = vrot.slane %v1865, %v1896
        %1898 = vset.pattern.permute.xlu0 0
        %1899 = vperm.xlu0 %1898, %v1869
        %v1900 = vpop.permute.xlu0 %1899
        %1902 = vset.pattern.permute.xlu0 0
        %1903 = vperm.xlu0 %1902, %v1873
        %v1904 = vpop.permute.xlu0 %1903
        %1906 = vset.pattern.permute.xlu0 0
        %1907 = vperm.xlu0 %1906, %v1877
        %v1908 = vpop.permute.xlu0 %1907
        %1910 = vset.pattern.permute.xlu0 0
        %1911 = vperm.xlu0 %1910, %v1881
        %v1912 = vpop.permute.xlu0 %1911
        %1914 = vset.pattern.permute.xlu0 0
        %1915 = vperm.xlu0 %1914, %v1885
        %v1916 = vpop.permute.xlu0 %1915
        %1918 = vset.pattern.permute.xlu0 0
        %1919 = vperm.xlu0 %1918, %v1889
        %v1920 = vpop.permute.xlu0 %1919
        %1922 = vset.pattern.permute.xlu0 0
        %1923 = vperm.xlu0 %1922, %v1893
        %v1924 = vpop.permute.xlu0 %1923
        %1926 = vset.pattern.permute.xlu0 0
        %1927 = vperm.xlu0 %1926, %v1897
        %v1928 = vpop.permute.xlu0 %1927
        %v1930 = vmul.f32 %v1808, %v1900
        %v1931 = vmul.f32 %v1809, %v1904
        %v1932 = vmul.f32 %v1810, %v1908
        %v1933 = vmul.f32 %v1811, %v1912
        %v1934 = vmul.f32 %v1812, %v1916
        %v1935 = vmul.f32 %v1813, %v1920
        %v1936 = vmul.f32 %v1814, %v1924
        %v1937 = vmul.f32 %v1815, %v1928
        %v1938 = vadd.f32 %v1930, %v1931
        %v1939 = vadd.f32 %v1938, %v1932
        %v1940 = vadd.f32 %v1939, %v1933
        %v1941 = vadd.f32 %v1940, %v1934
        %v1942 = vadd.f32 %v1941, %v1935
        %v1943 = vadd.f32 %v1942, %v1936
        %v1944 = vadd.f32 %v1943, %v1937
        %v1945 = vadd.f32 %v1653, %v1944
        %v1946 = vadd.f32 %v1945, %v713
        %1947 = vmax.xlane.f32.xlu0 %v1946
        %v1948 = vpop.xlane.xlu0 %1947
        %v1949 = vsub.f32 %v1946, %v1948
        %v1950 = vmul.f32 %v1949, 1.442695
        %v1951 = vpow.pop %v1950
        %1952 = vadd.xlane.f32.xlu0 %v1951
        %v1953 = vpop.xlane.xlu0 %1952
        %v1954 = vrcp.pop %v1953
        %v1955 = vmul.f32 %v1951, %v1954
        %v1956 = vld [vmem:[%s366] sm:$0xff]
        %v1957 = vld [vmem:[%s366 + $0x8] sm:$0xff]
        %v1958 = vld [vmem:[%s366 + $0x10] sm:$0xff]
        %v1959 = vld [vmem:[%s366 + $0x18] sm:$0xff]
        %v1960 = vld [vmem:[%s366 + $0x20] sm:$0xff]
        %v1961 = vld [vmem:[%s366 + $0x28] sm:$0xff]
        %v1962 = vld [vmem:[%s366 + $0x30] sm:$0xff]
        %v1963 = vld [vmem:[%s366 + $0x38] sm:$0xff]
        %v1964 = vld [vmem:[%s366 + $0x40] sm:$0xff]
        %v1965 = vld [vmem:[%s366 + $0x48] sm:$0xff]
        %v1966 = vld [vmem:[%s366 + $0x50] sm:$0xff]
        %v1967 = vld [vmem:[%s366 + $0x58] sm:$0xff]
        %v1968 = vld [vmem:[%s366 + $0x60] sm:$0xff]
        %v1969 = vld [vmem:[%s366 + $0x68] sm:$0xff]
        %v1970 = vld [vmem:[%s366 + $0x70] sm:$0xff]
        %v1971 = vld [vmem:[%s366 + $0x78] sm:$0xff]
        %1972 = vmatprep.subr.mxu0 0.0
        %1973 = vmatpush1.msra.mxu0 %v1956
        %1974 = vmatprep.subr.mxu0 0.0
        %1975 = vmatpush1.msra.mxu0 %v1957
        %1976 = vmatprep.subr.mxu0 0.0
        %1977 = vmatpush1.msra.mxu0 %v1958
        %1978 = vmatprep.subr.mxu0 0.0
        %1979 = vmatpush1.msra.mxu0 %v1959
        %1980 = vmatprep.subr.mxu0 0.0
        %1981 = vmatpush1.msra.mxu0 %v1960
        %1982 = vmatprep.subr.mxu0 0.0
        %1983 = vmatpush1.msra.mxu0 %v1961
        %1984 = vmatprep.subr.mxu0 0.0
        %1985 = vmatpush1.msra.mxu0 %v1962
        %1986 = vmatprep.subr.mxu0 0.0
        %1987 = vmatpush1.msra.mxu0 %v1963
        %1988 = vmatprep.subr.mxu0 0.0
        %1989 = vmatpush1.msra.mxu0 %v1964
        %1990 = vmatprep.subr.mxu0 0.0
        %1991 = vmatpush1.msra.mxu0 %v1965
        %1992 = vmatprep.subr.mxu0 0.0
        %1993 = vmatpush1.msra.mxu0 %v1966
        %1994 = vmatprep.subr.mxu0 0.0
        %1995 = vmatpush1.msra.mxu0 %v1967
        %1996 = vmatprep.subr.mxu0 0.0
        %1997 = vmatpush1.msra.mxu0 %v1968
        %1998 = vmatprep.subr.mxu0 0.0
        %1999 = vmatpush1.msra.mxu0 %v1969
        %2000 = vmatprep.subr.mxu0 0.0
        %2001 = vmatpush1.msra.mxu0 %v1970
        %2002 = vmatprep.subr.mxu0 0.0
        %2003 = vmatpush1.msra.mxu0 %v1971
        %2004 = vmatprep.subr.mxu0 0.0
        %2005 = vmatpush1.msra.mxu0 0.0
        %2006 = vmatprep.subr.mxu0 0.0
        %2007 = vmatpush1.msra.mxu0 0.0
        %2008 = vmatprep.subr.mxu0 0.0
        %2009 = vmatpush1.msra.mxu0 0.0
        %2010 = vmatprep.subr.mxu0 0.0
        %2011 = vmatpush1.msra.mxu0 0.0
        %2012 = vmatprep.subr.mxu0 0.0
        %2013 = vmatpush1.msra.mxu0 0.0
        %2014 = vmatprep.subr.mxu0 0.0
        %2015 = vmatpush1.msra.mxu0 0.0
        %2016 = vmatprep.subr.mxu0 0.0
        %2017 = vmatpush1.msra.mxu0 0.0
        %2018 = vmatprep.subr.mxu0 0.0
        %2019 = vmatpush1.msra.mxu0 0.0
        %2020 = vmatprep.subr.mxu0 0.0
        %2021 = vmatpush1.msra.mxu0 0.0
        %2022 = vmatprep.subr.mxu0 0.0
        %2023 = vmatpush1.msra.mxu0 0.0
        %2024 = vmatprep.subr.mxu0 0.0
        %2025 = vmatpush1.msra.mxu0 0.0
        %2026 = vmatprep.subr.mxu0 0.0
        %2027 = vmatpush1.msra.mxu0 0.0
        %2028 = vmatprep.subr.mxu0 0.0
        %2029 = vmatpush1.msra.mxu0 0.0
        %2030 = vmatprep.subr.mxu0 0.0
        %2031 = vmatpush1.msra.mxu0 0.0
        %2032 = vmatprep.subr.mxu0 0.0
        %2033 = vmatpush1.msra.mxu0 0.0
        %2034 = vmatprep.subr.mxu0 0.0
        %2035 = vmatpush1.msra.mxu0 0.0
        %2036 = vmatprep.mubr.f32.mxu0 0.0
        %2037 = vmatmul.mubr.f32.gmra.mrb[0].mxu0 %v1955
        %v2038 = vpop.f32.mrb[0].mxu0
        %v2039 = vadd.f32 0.0, %v2038
        %v2040 = vpop.f32.mrb[0].mxu0
        %2041 = vdwg.mxu0
        %2042 = vst [vmem:[%s408] sm:$0xff] %v2039
        %2043 = vst [vmem:[%s415] sm:$0xff] %v1945
        %2044 = vst [vmem:[%s422] sm:$0xff] %v1955
        %s2045 = sand.u32 %s216, 1
        %s2046 = scalar_lea.sflag [#allocation4], %s2045
        %s2047 = sand.u32 %s216, 1
        %s2048 = smul.addr %s2047, 8
        %s2049 = scalar_lea.vmem [#allocation5], %s2048
        %s2050 = sand.u32 %s30, 1
        %s2051 = scalar_lea.sflag [#allocation7], %s2050
        %s2052 = sand.u32 %s244, 1
        %s2053 = smul.addr %s2052, 8
        %s2054 = scalar_lea.vmem [#allocation6], %s2053
        %s2055 = sand.u32 %s30, 1
        %s2056 = scalar_lea.sflag [#allocation7], %s2055
        %s2057 = sand.u32 %s272, 1
        %s2058 = smul.addr %s2057, 8
        %s2059 = scalar_lea.vmem [#allocation8], %s2058
        // Predicated region
        $region53: #{tpu_custom_call.1} parent=47 // pred_check
          %p2060 = pneg %p226
        $region54: #{tpu_custom_call.1} parent=47 // pred_check_branch
          %2062 = sbr.rel (%p2060) target = $region56
        $region55: #{tpu_custom_call.1} parent=47 // pred_region
          %s2064 = ssub.s32 128, 128
          %2065 = vsyncadd %s2046, %s2064
          %s2066 = sadd.s32 %s35, %s34
          %s2067 = smul.addr %s2066, 128
          %s2068 = scalar_lea.hbm %s7, %s2067
          %s2070 = sshll.u32 %s2049, 4
          %s2071 = int_to_ptr.vmem [resolvable:$true] %s2070
          %2073 = dma.vmem_to_hbm [thread:$0]  %s2071, 128, %s2068, %s2046
        $region56: #{tpu_custom_call.1} parent=47 // pred_fallthru
          _
        // Predicated region
        $region57: #{tpu_custom_call.1} parent=47 // pred_check
          %p2074 = pneg %p254
        $region58: #{tpu_custom_call.1} parent=47 // pred_check_branch
          %2076 = sbr.rel (%p2074) target = $region60
        $region59: #{tpu_custom_call.1} parent=47 // pred_region
          %s2078 = ssub.s32 128, 128
          %2079 = vsyncadd %s2051, %s2078
          %s2080 = sadd.s32 %s35, %s34
          %s2081 = smul.addr %s2080, 128
          %s2082 = scalar_lea.hbm %s8, %s2081
          %s2084 = sshll.u32 %s2054, 4
          %s2085 = int_to_ptr.vmem [resolvable:$true] %s2084
          %2087 = dma.vmem_to_hbm [thread:$0]  %s2085, 128, %s2082, %s2051
        $region60: #{tpu_custom_call.1} parent=47 // pred_fallthru
          _
        // Predicated region
        $region61: #{tpu_custom_call.1} parent=47 // pred_check
          %p2088 = pneg %p282
        $region62: #{tpu_custom_call.1} parent=47 // pred_check_branch
          %2090 = sbr.rel (%p2088) target = $region64
        $region63: #{tpu_custom_call.1} parent=47 // pred_region
          %s2092 = ssub.s32 128, 128
          %2093 = vsyncadd %s2056, %s2092
          %s2094 = sadd.s32 %s35, %s34
          %s2095 = smul.addr %s2094, 128
          %s2096 = scalar_lea.hbm %s9, %s2095
          %s2098 = sshll.u32 %s2059, 4
          %s2099 = int_to_ptr.vmem [resolvable:$true] %s2098
          %2101 = dma.vmem_to_hbm [thread:$0]  %s2099, 128, %s2096, %s2056
        $region64: #{tpu_custom_call.1} parent=47 // pred_fallthru
          _
      $region48: #{tpu_custom_call.1} parent=5 // pred_fallthru
        _
      %p2102 = scmp.le.s32.totalorder 2, %s25
      // Predicated region
      $region65: #{tpu_custom_call.1} parent=5 // pred_check
        %p2103 = pneg %p2102
      $region66: #{tpu_custom_call.1} parent=5 // pred_check_branch
        %2105 = sbr.rel (%p2103) target = $region68
      $region67: #{tpu_custom_call.1} parent=5 // pred_region
        %s2106 = ssub.s32 %s25, 2
        // Predicated region
        $region69: #{tpu_custom_call.1} parent=67 // pred_check
          %p2107 = pneg %p232
        $region70: #{tpu_custom_call.1} parent=67 // pred_check_branch
          %2109 = sbr.rel (%p2107) target = $region72
        $region71: #{tpu_custom_call.1} parent=67 // pred_region
          %s2110 = sand.u32 %s217, 1
          %s2111 = scalar_lea.sflag [#allocation4], %s2110
          %s2112 = sand.u32 %s217, 1
          %s2113 = smul.addr %s2112, 8
          %s2114 = scalar_lea.vmem [#allocation5], %s2113
          %2115 = dma.done %s2111, 128
        $region72: #{tpu_custom_call.1} parent=67 // pred_fallthru
          _
        // Predicated region
        $region73: #{tpu_custom_call.1} parent=67 // pred_check
          %p2116 = pneg %p260
        $region74: #{tpu_custom_call.1} parent=67 // pred_check_branch
          %2118 = sbr.rel (%p2116) target = $region76
        $region75: #{tpu_custom_call.1} parent=67 // pred_region
          %s2119 = sand.u32 %s31, 1
          %s2120 = scalar_lea.sflag [#allocation7], %s2119
          %s2121 = sand.u32 %s245, 1
          %s2122 = smul.addr %s2121, 8
          %s2123 = scalar_lea.vmem [#allocation6], %s2122
          %2124 = dma.done %s2120, 128
        $region76: #{tpu_custom_call.1} parent=67 // pred_fallthru
          _
        // Predicated region
        $region77: #{tpu_custom_call.1} parent=67 // pred_check
          %p2125 = pneg %p288
        $region78: #{tpu_custom_call.1} parent=67 // pred_check_branch
          %2127 = sbr.rel (%p2125) target = $region80
        $region79: #{tpu_custom_call.1} parent=67 // pred_region
          %s2128 = sand.u32 %s31, 1
          %s2129 = scalar_lea.sflag [#allocation7], %s2128
          %s2130 = sand.u32 %s273, 1
          %s2131 = smul.addr %s2130, 8
          %s2132 = scalar_lea.vmem [#allocation8], %s2131
          %2133 = dma.done %s2129, 128
        $region80: #{tpu_custom_call.1} parent=67 // pred_fallthru
          _
      $region68: #{tpu_custom_call.1} parent=5 // pred_fallthru
        _
    $region6: #{tpu_custom_call.1} parent=1 // loop_footer
      %s29 = sadd.s32 1, %s25
    $region7: #{tpu_custom_call.1} parent=1 // loop_footer_branch
      %24 = sbr.rel target = $region3
    $region8: #{tpu_custom_call.1} parent=1 // loop_exit
      _
    %2134 = vsyncpa [#allocation3], 1
    %s2135 = scalar_lea.sflag [#allocation3], 1
    %2136 = vsyncpa %s2135, 1
    %2137 = vsyncpa [#allocation4], 1
    %s2138 = scalar_lea.sflag [#allocation4], 1
    %2139 = vsyncpa %s2138, 1
    %2140 = vsyncpa [#allocation7], 1
    %s2141 = scalar_lea.sflag [#allocation7], 1
    %2142 = vsyncpa %s2141, 1

</llo_original>
